<compile_context>
chip_gen: v5e
topology: v5e:2x2
jax: 0.10.0
libtpu: 0.0.40
codegen_flags: <defaults>
</compile_context>

<pallas_src>
import numpy as np
import jax
import jax.numpy as jnp
from jax.experimental import pallas as pl
from jax.experimental.pallas import tpu as pltpu

REGIME_DIM = 8
HIDDEN_DIM = 32
N_LAYERS = 2
OUT_DIM = 16
B_PAD = 8                                  # native 8-sublane tile

_H = HIDDEN_DIM
_G4 = 4 * _H                               # 128 gate lanes per layer
# Row offsets inside the packed projection slab (8-row aligned sections).
_PW1_ROW, _PB1_ROW, _PW2_ROW, _PB2_ROW, _PROJ_ROWS = 0, _H, 40, 72, 80


def temporal_regime_encoder_kernel(x2d_ref, wb_ref, wf_ref, hc0_ref, proj_ref,
                                   out_ref):
    """Inputs (all VMEM; gate order [i,f,o,g]; g-columns pre-scaled by 2):
         x2d_ref : [S*B_PAD, D]     time-major input, batch padded
         wb_ref  : [D+2, 4H]        rows 0:D = Wih0, row D = b0, row D+1 = b1
         wf_ref  : [2H, 8H]         fused recurrent weight [[Wih1,Whh0],[Whh1,0]]
         hc0_ref : [4, B_PAD, H]    h0(l0), h0(l1), c0(l0), c0(l1)
         proj_ref: [80, H]          pw1 / pb1 / pw2(pad) / pb2(pad) slab
       Output:
         out_ref : [B_PAD, 4H]      lanes 0:16 feat, 32:64 hn[0], 64:96 hn[1]
    """
    H, G4 = _H, _G4
    D = x2d_ref.shape[1]
    Bp = out_ref.shape[0]
    S = x2d_ref.shape[0] // Bp

    # ------------------ hoisted, once-per-call work ------------------------
    wb = wb_ref[...]
    wih0 = wb[:D]                                           # [D, 4H]
    b0 = wb[D:D + 1]                                        # [1, 4H]
    b1 = jnp.broadcast_to(wb[D + 1:D + 2], (Bp, G4))        # hoisted broadcast

    # Layer-0 input projection for ALL timesteps in one MXU pass (off the
    # recurrence critical path), bias added once.
    xw0 = (jnp.dot(x2d_ref[...], wih0, preferred_element_type=jnp.float32)
           + b0).reshape(S, Bp, G4)                         # [S, B_PAD, 4H]

    wf = wf_ref[...]                                        # [2H, 8H]

    h0 = hc0_ref[0]
    h1 = hc0_ref[1]
    c0 = hc0_ref[2]
    c1 = hc0_ref[3]

    def cell(s, c):
        # s = sigmoid(gates) over [Bp, 4H] in [i, f, o, g*] order, where the
        # g columns were pre-scaled x2, so tanh(pre) == 2*s_g - 1 (VPU fixup).
        g = 2.0 * s[:, 3 * H:4 * H] - 1.0
        c_new = s[:, H:2 * H] * c + s[:, :H] * g
        h_new = s[:, 2 * H:3 * H] * jnp.tanh(c_new)
        return h_new, c_new

    # ------------------ prime: layer-0 recurrent term for step 0 -----------
    z = jnp.dot(jnp.concatenate([h0, h1], axis=1), wf,
                preferred_element_type=jnp.float32)          # [Bp, 8H]
    h0, c0 = cell(jax.nn.sigmoid(z[:, G4:] + xw0[0]), c0)    # layer 0, t = 0

    # ------------------ fused recurrence (fully unrolled) -------------------
    # One matmul per step: cols 0:4H -> layer-1 gates for step t,
    #                      cols 4H:8H -> layer-0 recurrent term for step t+1.
    # TODO(synk): inter-layer dropout (p=0.1) is train-mode only; inference path.
    for t in range(S):
        z = jnp.dot(jnp.concatenate([h0, h1], axis=1), wf,
                    preferred_element_type=jnp.float32)      # [Bp, 8H]
        h1, c1 = cell(jax.nn.sigmoid(z[:, :G4] + b1), c1)    # layer 1, step t
        if t + 1 < S:                                        # layer 0, step t+1
            h0, c0 = cell(jax.nn.sigmoid(z[:, G4:] + xw0[t + 1]), c0)

    # ------------------ projection head + packed lane-dense output ---------
    proj = proj_ref[...]
    hid = jnp.maximum(
        jnp.dot(h1, proj[_PW1_ROW:_PW1_ROW + H],
                preferred_element_type=jnp.float32)
        + proj[_PB1_ROW:_PB1_ROW + 1], 0.0)
    feat = (jnp.dot(hid, proj[_PW2_ROW:_PW2_ROW + H],
                    preferred_element_type=jnp.float32)
            + proj[_PB2_ROW:_PB2_ROW + 1])                   # [Bp, H] (lanes 16:32 are 0)

    # Single full-width (unmasked) store: [feat | hn0 | hn1 | 0] -> [Bp, 128].
    out_ref[...] = jnp.concatenate(
        [feat, h0, h1, jnp.zeros((Bp, H), jnp.float32)], axis=1)


# ---------------------------------------------------------------------------
# One-time weight packing (keep OUT of the per-call jitted path).
# ---------------------------------------------------------------------------
def _prep_gates(w):
    """[*, 4H] PyTorch gate order [i,f,g,o] -> [i,f,o,g], g columns scaled x2
    (folds tanh into the single sigmoid pass: tanh(x) = 2*sigmoid(2x) - 1)."""
    H = HIDDEN_DIM
    return jnp.concatenate(
        [w[..., :2 * H], w[..., 3 * H:4 * H], 2.0 * w[..., 2 * H:3 * H]],
        axis=-1).astype(jnp.float32)


def pack_params(params):
    """Pack PyTorch-layout parameters into the 3 static kernel weight slabs."""
    H = HIDDEN_DIM
    wih0 = _prep_gates(params["wih0"])          # [D, 4H]
    whh0 = _prep_gates(params["whh0"])          # [H, 4H]
    b0 = _prep_gates(params["b0"])              # [1, 4H]
    wih1 = _prep_gates(params["wih1"])          # [H, 4H]
    whh1 = _prep_gates(params["whh1"])          # [H, 4H]
    b1 = _prep_gates(params["b1"])              # [1, 4H]

    wb = jnp.concatenate([wih0, b0, b1], axis=0)                       # [D+2, 4H]
    wf = jnp.concatenate(
        [jnp.concatenate([wih1, whh0], axis=1),                        # [H, 8H]
         jnp.concatenate([whh1, jnp.zeros_like(whh0)], axis=1)],       # [H, 8H]
        axis=0)                                                        # [2H, 8H]

    proj = jnp.zeros((_PROJ_ROWS, H), jnp.float32)
    proj = proj.at[_PW1_ROW:_PW1_ROW + H].set(params["pw1"])
    proj = proj.at[_PB1_ROW].set(params["pb1"][0])
    proj = proj.at[_PW2_ROW:_PW2_ROW + H, :OUT_DIM].set(params["pw2"])
    proj = proj.at[_PB2_ROW, :OUT_DIM].set(params["pb2"][0])

    return {"wb": wb, "wf": wf, "proj": proj,
            "h0": jnp.asarray(params["h0"], jnp.float32),
            "c0": jnp.asarray(params["c0"], jnp.float32)}


@jax.jit
def temporal_regime_encoder(x, packed):
    """x: [B, S, REGIME_DIM] f32, packed = pack_params(...)
       -> (feat [B, 16], hn [2, B, HIDDEN_DIM])."""
    B, S, D = x.shape
    H = HIDDEN_DIM
    assert D == REGIME_DIM and B <= B_PAD

    # Layout plumbing only: time-major, batch padded to the 8-sublane tile.
    x2d = jnp.pad(jnp.transpose(x, (1, 0, 2)),
                  ((0, 0), (0, B_PAD - B), (0, 0))).reshape(S * B_PAD, D)
    h0 = jnp.broadcast_to(packed["h0"], (N_LAYERS, B, H))
    c0 = jnp.broadcast_to(packed["c0"], (N_LAYERS, B, H))
    hc0 = jnp.pad(jnp.concatenate([h0, c0], axis=0),
                  ((0, 0), (0, B_PAD - B), (0, 0)))          # [4, B_PAD, H]

    vmem = pl.BlockSpec(memory_space=pltpu.MemorySpace.VMEM)
    out = pl.pallas_call(
        temporal_regime_encoder_kernel,
        out_shape=jax.ShapeDtypeStruct((B_PAD, 4 * H), jnp.float32),
        in_specs=[vmem] * 5,
        out_specs=vmem,
    )(x2d, packed["wb"], packed["wf"], hc0, packed["proj"])

    feat = out[:B, :OUT_DIM]
    hn = jnp.stack([out[:B, H:2 * H], out[:B, 2 * H:3 * H]], axis=0)
    return feat, hn


# ---------------------------------------------------------------------------
# Deterministic synthetic parameters + pure-JAX reference for validation.
# ---------------------------------------------------------------------------
def init_params(key):
    """Shapes per the PyTorch __init__. Stored pre-transposed as [in, out] with
    PyTorch gate order [i,f,g,o]; biases combined (bih+bhh) shaped [1, out]."""
    H, D = HIDDEN_DIM, REGIME_DIM
    ks = jax.random.split(key, 12)
    klstm = 1.0 / np.sqrt(H)

    def u(k, shape, bound):
        return jax.random.uniform(k, shape, jnp.float32, -bound, bound)

    wih0 = u(ks[0], (4 * H, D), klstm)
    whh0 = u(ks[1], (4 * H, H), klstm)
    bih0 = u(ks[2], (4 * H,), klstm)
    bhh0 = u(ks[3], (4 * H,), klstm)
    wih1 = u(ks[4], (4 * H, H), klstm)
    whh1 = u(ks[5], (4 * H, H), klstm)
    bih1 = u(ks[6], (4 * H,), klstm)
    bhh1 = u(ks[7], (4 * H,), klstm)

    kp1 = 1.0 / np.sqrt(H)
    pw1 = u(ks[8], (H, H), kp1)
    pb1 = u(ks[9], (H,), kp1)
    pw2 = u(ks[10], (OUT_DIM, H), kp1)
    pb2 = u(ks[11], (OUT_DIM,), kp1)

    return {
        "wih0": wih0.T, "whh0": whh0.T, "b0": (bih0 + bhh0)[None, :],
        "wih1": wih1.T, "whh1": whh1.T, "b1": (bih1 + bhh1)[None, :],
        "h0": jnp.zeros((N_LAYERS, 1, H), jnp.float32),   # nn.Parameter zeros
        "c0": jnp.zeros((N_LAYERS, 1, H), jnp.float32),
        "pw1": pw1.T, "pb1": pb1[None, :],
        "pw2": pw2.T, "pb2": pb2[None, :],
    }


def reference_forward(x, params):
    """Pure-JAX reference of the same (inference) semantics."""
    B, S, _ = x.shape
    H = HIDDEN_DIM

    def cell(x_t, h, c, w_ih, w_hh, b):
        g = x_t @ w_ih + h @ w_hh + b
        i = jax.nn.sigmoid(g[:, :H])
        f = jax.nn.sigmoid(g[:, H:2 * H])
        gg = jnp.tanh(g[:, 2 * H:3 * H])
        o = jax.nn.sigmoid(g[:, 3 * H:])
        c_new = f * c + i * gg
        return o * jnp.tanh(c_new), c_new

    h0 = jnp.broadcast_to(params["h0"][0], (B, H))
    c0 = jnp.broadcast_to(params["c0"][0], (B, H))
    h1 = jnp.broadcast_to(params["h0"][1], (B, H))
    c1 = jnp.broadcast_to(params["c0"][1], (B, H))
    for t in range(S):
        h0, c0 = cell(x[:, t, :], h0, c0, params["wih0"], params["whh0"], params["b0"])
        h1, c1 = cell(h0, h1, c1, params["wih1"], params["whh1"], params["b1"])
    hid = jnp.maximum(h1 @ params["pw1"] + params["pb1"], 0.0)
    feat = hid @ params["pw2"] + params["pb2"]
    hn = jnp.stack([h0, h1], axis=0)
    return feat, hn


if __name__ == "__main__":
    key = jax.random.PRNGKey(0)
    k_x, k_p = jax.random.split(key)

    batch, seq_len = 2, 8
    x = jax.random.normal(k_x, (batch, seq_len, REGIME_DIM), jnp.float32)
    params = init_params(k_p)

    packed = pack_params(params)        # one-time packing, outside the hot path

    feat, hn = temporal_regime_encoder(x, packed)
    feat, hn = jax.block_until_ready((feat, hn))

    feat_ref, hn_ref = reference_forward(x, params)
    assert feat.shape == (batch, OUT_DIM)
    assert hn.shape == (N_LAYERS, batch, HIDDEN_DIM)
    # Tolerance 1e-4: identical math, but the tanh-as-sigmoid fold and fused-
    # matmul accumulation order introduce ~1e-6-level per-step differences.
    np.testing.assert_allclose(np.asarray(feat), np.asarray(feat_ref),
                               rtol=1e-4, atol=1e-4)
    np.testing.assert_allclose(np.asarray(hn), np.asarray(hn_ref),
                               rtol=1e-4, atol=1e-4)

    print("KERNEL_OK")
</pallas_src>

<mosaic_0001>
module attributes {stable_mosaic.version = 11 : i64} {
  func.func @temporal_regime_encoder_kernel(%arg0: memref<64x8xf32, #tpu.memory_space<vmem>>, %arg1: memref<10x128xf32, #tpu.memory_space<vmem>>, %arg2: memref<64x256xf32, #tpu.memory_space<vmem>>, %arg3: memref<4x8x32xf32, #tpu.memory_space<vmem>>, %arg4: memref<80x32xf32, #tpu.memory_space<vmem>>, %arg5: memref<8x128xf32, #tpu.memory_space<vmem>>) attributes {dimension_semantics = [], scalar_prefetch = 0 : i64, scratch_operands = 0 : i64, tpu.core_type = #tpu.core_type<tc>} {
    %c0 = arith.constant 0 : index
    %c0_0 = arith.constant 0 : index
    %0 = vector.load %arg1[%c0, %c0_0] : memref<10x128xf32, #tpu.memory_space<vmem>>, vector<10x128xf32>
    %1 = vector.extract_strided_slice %0 {offsets = [0, 0], sizes = [8, 128], strides = [1, 1]} : vector<10x128xf32> to vector<8x128xf32>
    %2 = vector.extract_strided_slice %0 {offsets = [8, 0], sizes = [1, 128], strides = [1, 1]} : vector<10x128xf32> to vector<1x128xf32>
    %3 = vector.extract_strided_slice %0 {offsets = [9, 0], sizes = [1, 128], strides = [1, 1]} : vector<10x128xf32> to vector<1x128xf32>
    %4 = vector.shape_cast %3 : vector<1x128xf32> to vector<1x128xf32>
    %5 = vector.broadcast %4 : vector<1x128xf32> to vector<8x128xf32>
    %c0_1 = arith.constant 0 : index
    %c0_2 = arith.constant 0 : index
    %6 = vector.load %arg0[%c0_1, %c0_2] : memref<64x8xf32, #tpu.memory_space<vmem>>, vector<64x8xf32>
    %cst = arith.constant dense<0.000000e+00> : vector<64x128xf32>
    %7 = tpu.matmul %6, %1, %cst {dimension_numbers = #tpu.dot_dimension_numbers<[1], [0], [0], [1], [0, 0, 1, 1], [], []>} : vector<64x8xf32>, vector<8x128xf32>, vector<64x128xf32> -> vector<64x128xf32>
    %8 = vector.broadcast %2 : vector<1x128xf32> to vector<64x128xf32>
    %9 = arith.addf %7, %8 : vector<64x128xf32>
    %10 = vector.shape_cast %9 : vector<64x128xf32> to vector<8x8x128xf32>
    %c0_3 = arith.constant 0 : index
    %c0_4 = arith.constant 0 : index
    %11 = vector.load %arg2[%c0_3, %c0_4] : memref<64x256xf32, #tpu.memory_space<vmem>>, vector<64x256xf32>
    %c0_5 = arith.constant 0 : index
    %c0_6 = arith.constant 0 : index
    %c0_7 = arith.constant 0 : index
    %12 = vector.load %arg3[%c0_5, %c0_6, %c0_7] : memref<4x8x32xf32, #tpu.memory_space<vmem>>, vector<1x8x32xf32>
    %13 = vector.shape_cast %12 : vector<1x8x32xf32> to vector<8x32xf32>
    %c1 = arith.constant 1 : index
    %c0_8 = arith.constant 0 : index
    %c0_9 = arith.constant 0 : index
    %14 = vector.load %arg3[%c1, %c0_8, %c0_9] : memref<4x8x32xf32, #tpu.memory_space<vmem>>, vector<1x8x32xf32>
    %15 = vector.shape_cast %14 : vector<1x8x32xf32> to vector<8x32xf32>
    %c2 = arith.constant 2 : index
    %c0_10 = arith.constant 0 : index
    %c0_11 = arith.constant 0 : index
    %16 = vector.load %arg3[%c2, %c0_10, %c0_11] : memref<4x8x32xf32, #tpu.memory_space<vmem>>, vector<1x8x32xf32>
    %17 = vector.shape_cast %16 : vector<1x8x32xf32> to vector<8x32xf32>
    %c3 = arith.constant 3 : index
    %c0_12 = arith.constant 0 : index
    %c0_13 = arith.constant 0 : index
    %18 = vector.load %arg3[%c3, %c0_12, %c0_13] : memref<4x8x32xf32, #tpu.memory_space<vmem>>, vector<1x8x32xf32>
    %19 = vector.shape_cast %18 : vector<1x8x32xf32> to vector<8x32xf32>
    %20 = tpu.concatenate %13, %15 in 1 : vector<8x32xf32>, vector<8x32xf32> -> vector<8x64xf32>
    %cst_14 = arith.constant dense<0.000000e+00> : vector<8x256xf32>
    %21 = tpu.matmul %20, %11, %cst_14 {dimension_numbers = #tpu.dot_dimension_numbers<[1], [0], [0], [1], [0, 0, 1, 1], [], []>} : vector<8x64xf32>, vector<64x256xf32>, vector<8x256xf32> -> vector<8x256xf32>
    %22 = vector.extract_strided_slice %21 {offsets = [0, 128], sizes = [8, 128], strides = [1, 1]} : vector<8x256xf32> to vector<8x128xf32>
    %23 = vector.extract_strided_slice %10 {offsets = [0, 0, 0], sizes = [1, 8, 128], strides = [1, 1, 1]} : vector<8x8x128xf32> to vector<1x8x128xf32>
    %24 = vector.shape_cast %23 : vector<1x8x128xf32> to vector<8x128xf32>
    %25 = arith.addf %22, %24 : vector<8x128xf32>
    %26 = arith.negf %25 : vector<8x128xf32>
    %27 = math.exp %26 : vector<8x128xf32>
    %cst_15 = arith.constant 1.000000e+00 : f32
    %28 = vector.broadcast %cst_15 : f32 to vector<8x128xf32>
    %29 = arith.addf %28, %27 : vector<8x128xf32>
    %30 = arith.divf %28, %29 : vector<8x128xf32>
    %31 = vector.extract_strided_slice %30 {offsets = [0, 96], sizes = [8, 32], strides = [1, 1]} : vector<8x128xf32> to vector<8x32xf32>
    %cst_16 = arith.constant 2.000000e+00 : f32
    %32 = vector.broadcast %cst_16 : f32 to vector<8x32xf32>
    %33 = arith.mulf %32, %31 : vector<8x32xf32>
    %cst_17 = arith.constant 1.000000e+00 : f32
    %34 = vector.broadcast %cst_17 : f32 to vector<8x32xf32>
    %35 = arith.subf %33, %34 : vector<8x32xf32>
    %36 = vector.extract_strided_slice %30 {offsets = [0, 32], sizes = [8, 32], strides = [1, 1]} : vector<8x128xf32> to vector<8x32xf32>
    %37 = arith.mulf %36, %17 : vector<8x32xf32>
    %38 = vector.extract_strided_slice %30 {offsets = [0, 0], sizes = [8, 32], strides = [1, 1]} : vector<8x128xf32> to vector<8x32xf32>
    %39 = arith.mulf %38, %35 : vector<8x32xf32>
    %40 = arith.addf %37, %39 : vector<8x32xf32>
    %41 = vector.extract_strided_slice %30 {offsets = [0, 64], sizes = [8, 32], strides = [1, 1]} : vector<8x128xf32> to vector<8x32xf32>
    %42 = math.tanh %40 : vector<8x32xf32>
    %43 = arith.mulf %41, %42 : vector<8x32xf32>
    %44 = tpu.concatenate %43, %15 in 1 : vector<8x32xf32>, vector<8x32xf32> -> vector<8x64xf32>
    %cst_18 = arith.constant dense<0.000000e+00> : vector<8x256xf32>
    %45 = tpu.matmul %44, %11, %cst_18 {dimension_numbers = #tpu.dot_dimension_numbers<[1], [0], [0], [1], [0, 0, 1, 1], [], []>} : vector<8x64xf32>, vector<64x256xf32>, vector<8x256xf32> -> vector<8x256xf32>
    %46 = vector.extract_strided_slice %45 {offsets = [0, 0], sizes = [8, 128], strides = [1, 1]} : vector<8x256xf32> to vector<8x128xf32>
    %47 = arith.addf %46, %5 : vector<8x128xf32>
    %48 = arith.negf %47 : vector<8x128xf32>
    %49 = math.exp %48 : vector<8x128xf32>
    %cst_19 = arith.constant 1.000000e+00 : f32
    %50 = vector.broadcast %cst_19 : f32 to vector<8x128xf32>
    %51 = arith.addf %50, %49 : vector<8x128xf32>
    %52 = arith.divf %50, %51 : vector<8x128xf32>
    %53 = vector.extract_strided_slice %52 {offsets = [0, 96], sizes = [8, 32], strides = [1, 1]} : vector<8x128xf32> to vector<8x32xf32>
    %cst_20 = arith.constant 2.000000e+00 : f32
    %54 = vector.broadcast %cst_20 : f32 to vector<8x32xf32>
    %55 = arith.mulf %54, %53 : vector<8x32xf32>
    %cst_21 = arith.constant 1.000000e+00 : f32
    %56 = vector.broadcast %cst_21 : f32 to vector<8x32xf32>
    %57 = arith.subf %55, %56 : vector<8x32xf32>
    %58 = vector.extract_strided_slice %52 {offsets = [0, 32], sizes = [8, 32], strides = [1, 1]} : vector<8x128xf32> to vector<8x32xf32>
    %59 = arith.mulf %58, %19 : vector<8x32xf32>
    %60 = vector.extract_strided_slice %52 {offsets = [0, 0], sizes = [8, 32], strides = [1, 1]} : vector<8x128xf32> to vector<8x32xf32>
    %61 = arith.mulf %60, %57 : vector<8x32xf32>
    %62 = arith.addf %59, %61 : vector<8x32xf32>
    %63 = vector.extract_strided_slice %52 {offsets = [0, 64], sizes = [8, 32], strides = [1, 1]} : vector<8x128xf32> to vector<8x32xf32>
    %64 = math.tanh %62 : vector<8x32xf32>
    %65 = arith.mulf %63, %64 : vector<8x32xf32>
    %66 = vector.extract_strided_slice %45 {offsets = [0, 128], sizes = [8, 128], strides = [1, 1]} : vector<8x256xf32> to vector<8x128xf32>
    %67 = vector.extract_strided_slice %10 {offsets = [1, 0, 0], sizes = [1, 8, 128], strides = [1, 1, 1]} : vector<8x8x128xf32> to vector<1x8x128xf32>
    %68 = vector.shape_cast %67 : vector<1x8x128xf32> to vector<8x128xf32>
    %69 = arith.addf %66, %68 : vector<8x128xf32>
    %70 = arith.negf %69 : vector<8x128xf32>
    %71 = math.exp %70 : vector<8x128xf32>
    %cst_22 = arith.constant 1.000000e+00 : f32
    %72 = vector.broadcast %cst_22 : f32 to vector<8x128xf32>
    %73 = arith.addf %72, %71 : vector<8x128xf32>
    %74 = arith.divf %72, %73 : vector<8x128xf32>
    %75 = vector.extract_strided_slice %74 {offsets = [0, 96], sizes = [8, 32], strides = [1, 1]} : vector<8x128xf32> to vector<8x32xf32>
    %cst_23 = arith.constant 2.000000e+00 : f32
    %76 = vector.broadcast %cst_23 : f32 to vector<8x32xf32>
    %77 = arith.mulf %76, %75 : vector<8x32xf32>
    %cst_24 = arith.constant 1.000000e+00 : f32
    %78 = vector.broadcast %cst_24 : f32 to vector<8x32xf32>
    %79 = arith.subf %77, %78 : vector<8x32xf32>
    %80 = vector.extract_strided_slice %74 {offsets = [0, 32], sizes = [8, 32], strides = [1, 1]} : vector<8x128xf32> to vector<8x32xf32>
    %81 = arith.mulf %80, %40 : vector<8x32xf32>
    %82 = vector.extract_strided_slice %74 {offsets = [0, 0], sizes = [8, 32], strides = [1, 1]} : vector<8x128xf32> to vector<8x32xf32>
    %83 = arith.mulf %82, %79 : vector<8x32xf32>
    %84 = arith.addf %81, %83 : vector<8x32xf32>
    %85 = vector.extract_strided_slice %74 {offsets = [0, 64], sizes = [8, 32], strides = [1, 1]} : vector<8x128xf32> to vector<8x32xf32>
    %86 = math.tanh %84 : vector<8x32xf32>
    %87 = arith.mulf %85, %86 : vector<8x32xf32>
    %88 = tpu.concatenate %87, %65 in 1 : vector<8x32xf32>, vector<8x32xf32> -> vector<8x64xf32>
    %cst_25 = arith.constant dense<0.000000e+00> : vector<8x256xf32>
    %89 = tpu.matmul %88, %11, %cst_25 {dimension_numbers = #tpu.dot_dimension_numbers<[1], [0], [0], [1], [0, 0, 1, 1], [], []>} : vector<8x64xf32>, vector<64x256xf32>, vector<8x256xf32> -> vector<8x256xf32>
    %90 = vector.extract_strided_slice %89 {offsets = [0, 0], sizes = [8, 128], strides = [1, 1]} : vector<8x256xf32> to vector<8x128xf32>
    %91 = arith.addf %90, %5 : vector<8x128xf32>
    %92 = arith.negf %91 : vector<8x128xf32>
    %93 = math.exp %92 : vector<8x128xf32>
    %cst_26 = arith.constant 1.000000e+00 : f32
    %94 = vector.broadcast %cst_26 : f32 to vector<8x128xf32>
    %95 = arith.addf %94, %93 : vector<8x128xf32>
    %96 = arith.divf %94, %95 : vector<8x128xf32>
    %97 = vector.extract_strided_slice %96 {offsets = [0, 96], sizes = [8, 32], strides = [1, 1]} : vector<8x128xf32> to vector<8x32xf32>
    %cst_27 = arith.constant 2.000000e+00 : f32
    %98 = vector.broadcast %cst_27 : f32 to vector<8x32xf32>
    %99 = arith.mulf %98, %97 : vector<8x32xf32>
    %cst_28 = arith.constant 1.000000e+00 : f32
    %100 = vector.broadcast %cst_28 : f32 to vector<8x32xf32>
    %101 = arith.subf %99, %100 : vector<8x32xf32>
    %102 = vector.extract_strided_slice %96 {offsets = [0, 32], sizes = [8, 32], strides = [1, 1]} : vector<8x128xf32> to vector<8x32xf32>
    %103 = arith.mulf %102, %62 : vector<8x32xf32>
    %104 = vector.extract_strided_slice %96 {offsets = [0, 0], sizes = [8, 32], strides = [1, 1]} : vector<8x128xf32> to vector<8x32xf32>
    %105 = arith.mulf %104, %101 : vector<8x32xf32>
    %106 = arith.addf %103, %105 : vector<8x32xf32>
    %107 = vector.extract_strided_slice %96 {offsets = [0, 64], sizes = [8, 32], strides = [1, 1]} : vector<8x128xf32> to vector<8x32xf32>
    %108 = math.tanh %106 : vector<8x32xf32>
    %109 = arith.mulf %107, %108 : vector<8x32xf32>
    %110 = vector.extract_strided_slice %89 {offsets = [0, 128], sizes = [8, 128], strides = [1, 1]} : vector<8x256xf32> to vector<8x128xf32>
    %111 = vector.extract_strided_slice %10 {offsets = [2, 0, 0], sizes = [1, 8, 128], strides = [1, 1, 1]} : vector<8x8x128xf32> to vector<1x8x128xf32>
    %112 = vector.shape_cast %111 : vector<1x8x128xf32> to vector<8x128xf32>
    %113 = arith.addf %110, %112 : vector<8x128xf32>
    %114 = arith.negf %113 : vector<8x128xf32>
    %115 = math.exp %114 : vector<8x128xf32>
    %cst_29 = arith.constant 1.000000e+00 : f32
    %116 = vector.broadcast %cst_29 : f32 to vector<8x128xf32>
    %117 = arith.addf %116, %115 : vector<8x128xf32>
    %118 = arith.divf %116, %117 : vector<8x128xf32>
    %119 = vector.extract_strided_slice %118 {offsets = [0, 96], sizes = [8, 32], strides = [1, 1]} : vector<8x128xf32> to vector<8x32xf32>
    %cst_30 = arith.constant 2.000000e+00 : f32
    %120 = vector.broadcast %cst_30 : f32 to vector<8x32xf32>
    %121 = arith.mulf %120, %119 : vector<8x32xf32>
    %cst_31 = arith.constant 1.000000e+00 : f32
    %122 = vector.broadcast %cst_31 : f32 to vector<8x32xf32>
    %123 = arith.subf %121, %122 : vector<8x32xf32>
    %124 = vector.extract_strided_slice %118 {offsets = [0, 32], sizes = [8, 32], strides = [1, 1]} : vector<8x128xf32> to vector<8x32xf32>
    %125 = arith.mulf %124, %84 : vector<8x32xf32>
    %126 = vector.extract_strided_slice %118 {offsets = [0, 0], sizes = [8, 32], strides = [1, 1]} : vector<8x128xf32> to vector<8x32xf32>
    %127 = arith.mulf %126, %123 : vector<8x32xf32>
    %128 = arith.addf %125, %127 : vector<8x32xf32>
    %129 = vector.extract_strided_slice %118 {offsets = [0, 64], sizes = [8, 32], strides = [1, 1]} : vector<8x128xf32> to vector<8x32xf32>
    %130 = math.tanh %128 : vector<8x32xf32>
    %131 = arith.mulf %129, %130 : vector<8x32xf32>
    %132 = tpu.concatenate %131, %109 in 1 : vector<8x32xf32>, vector<8x32xf32> -> vector<8x64xf32>
    %cst_32 = arith.constant dense<0.000000e+00> : vector<8x256xf32>
    %133 = tpu.matmul %132, %11, %cst_32 {dimension_numbers = #tpu.dot_dimension_numbers<[1], [0], [0], [1], [0, 0, 1, 1], [], []>} : vector<8x64xf32>, vector<64x256xf32>, vector<8x256xf32> -> vector<8x256xf32>
    %134 = vector.extract_strided_slice %133 {offsets = [0, 0], sizes = [8, 128], strides = [1, 1]} : vector<8x256xf32> to vector<8x128xf32>
    %135 = arith.addf %134, %5 : vector<8x128xf32>
    %136 = arith.negf %135 : vector<8x128xf32>
    %137 = math.exp %136 : vector<8x128xf32>
    %cst_33 = arith.constant 1.000000e+00 : f32
    %138 = vector.broadcast %cst_33 : f32 to vector<8x128xf32>
    %139 = arith.addf %138, %137 : vector<8x128xf32>
    %140 = arith.divf %138, %139 : vector<8x128xf32>
    %141 = vector.extract_strided_slice %140 {offsets = [0, 96], sizes = [8, 32], strides = [1, 1]} : vector<8x128xf32> to vector<8x32xf32>
    %cst_34 = arith.constant 2.000000e+00 : f32
    %142 = vector.broadcast %cst_34 : f32 to vector<8x32xf32>
    %143 = arith.mulf %142, %141 : vector<8x32xf32>
    %cst_35 = arith.constant 1.000000e+00 : f32
    %144 = vector.broadcast %cst_35 : f32 to vector<8x32xf32>
    %145 = arith.subf %143, %144 : vector<8x32xf32>
    %146 = vector.extract_strided_slice %140 {offsets = [0, 32], sizes = [8, 32], strides = [1, 1]} : vector<8x128xf32> to vector<8x32xf32>
    %147 = arith.mulf %146, %106 : vector<8x32xf32>
    %148 = vector.extract_strided_slice %140 {offsets = [0, 0], sizes = [8, 32], strides = [1, 1]} : vector<8x128xf32> to vector<8x32xf32>
    %149 = arith.mulf %148, %145 : vector<8x32xf32>
    %150 = arith.addf %147, %149 : vector<8x32xf32>
    %151 = vector.extract_strided_slice %140 {offsets = [0, 64], sizes = [8, 32], strides = [1, 1]} : vector<8x128xf32> to vector<8x32xf32>
    %152 = math.tanh %150 : vector<8x32xf32>
    %153 = arith.mulf %151, %152 : vector<8x32xf32>
    %154 = vector.extract_strided_slice %133 {offsets = [0, 128], sizes = [8, 128], strides = [1, 1]} : vector<8x256xf32> to vector<8x128xf32>
    %155 = vector.extract_strided_slice %10 {offsets = [3, 0, 0], sizes = [1, 8, 128], strides = [1, 1, 1]} : vector<8x8x128xf32> to vector<1x8x128xf32>
    %156 = vector.shape_cast %155 : vector<1x8x128xf32> to vector<8x128xf32>
    %157 = arith.addf %154, %156 : vector<8x128xf32>
    %158 = arith.negf %157 : vector<8x128xf32>
    %159 = math.exp %158 : vector<8x128xf32>
    %cst_36 = arith.constant 1.000000e+00 : f32
    %160 = vector.broadcast %cst_36 : f32 to vector<8x128xf32>
    %161 = arith.addf %160, %159 : vector<8x128xf32>
    %162 = arith.divf %160, %161 : vector<8x128xf32>
    %163 = vector.extract_strided_slice %162 {offsets = [0, 96], sizes = [8, 32], strides = [1, 1]} : vector<8x128xf32> to vector<8x32xf32>
    %cst_37 = arith.constant 2.000000e+00 : f32
    %164 = vector.broadcast %cst_37 : f32 to vector<8x32xf32>
    %165 = arith.mulf %164, %163 : vector<8x32xf32>
    %cst_38 = arith.constant 1.000000e+00 : f32
    %166 = vector.broadcast %cst_38 : f32 to vector<8x32xf32>
    %167 = arith.subf %165, %166 : vector<8x32xf32>
    %168 = vector.extract_strided_slice %162 {offsets = [0, 32], sizes = [8, 32], strides = [1, 1]} : vector<8x128xf32> to vector<8x32xf32>
    %169 = arith.mulf %168, %128 : vector<8x32xf32>
    %170 = vector.extract_strided_slice %162 {offsets = [0, 0], sizes = [8, 32], strides = [1, 1]} : vector<8x128xf32> to vector<8x32xf32>
    %171 = arith.mulf %170, %167 : vector<8x32xf32>
    %172 = arith.addf %169, %171 : vector<8x32xf32>
    %173 = vector.extract_strided_slice %162 {offsets = [0, 64], sizes = [8, 32], strides = [1, 1]} : vector<8x128xf32> to vector<8x32xf32>
    %174 = math.tanh %172 : vector<8x32xf32>
    %175 = arith.mulf %173, %174 : vector<8x32xf32>
    %176 = tpu.concatenate %175, %153 in 1 : vector<8x32xf32>, vector<8x32xf32> -> vector<8x64xf32>
    %cst_39 = arith.constant dense<0.000000e+00> : vector<8x256xf32>
    %177 = tpu.matmul %176, %11, %cst_39 {dimension_numbers = #tpu.dot_dimension_numbers<[1], [0], [0], [1], [0, 0, 1, 1], [], []>} : vector<8x64xf32>, vector<64x256xf32>, vector<8x256xf32> -> vector<8x256xf32>
    %178 = vector.extract_strided_slice %177 {offsets = [0, 0], sizes = [8, 128], strides = [1, 1]} : vector<8x256xf32> to vector<8x128xf32>
    %179 = arith.addf %178, %5 : vector<8x128xf32>
    %180 = arith.negf %179 : vector<8x128xf32>
    %181 = math.exp %180 : vector<8x128xf32>
    %cst_40 = arith.constant 1.000000e+00 : f32
    %182 = vector.broadcast %cst_40 : f32 to vector<8x128xf32>
    %183 = arith.addf %182, %181 : vector<8x128xf32>
    %184 = arith.divf %182, %183 : vector<8x128xf32>
    %185 = vector.extract_strided_slice %184 {offsets = [0, 96], sizes = [8, 32], strides = [1, 1]} : vector<8x128xf32> to vector<8x32xf32>
    %cst_41 = arith.constant 2.000000e+00 : f32
    %186 = vector.broadcast %cst_41 : f32 to vector<8x32xf32>
    %187 = arith.mulf %186, %185 : vector<8x32xf32>
    %cst_42 = arith.constant 1.000000e+00 : f32
    %188 = vector.broadcast %cst_42 : f32 to vector<8x32xf32>
    %189 = arith.subf %187, %188 : vector<8x32xf32>
    %190 = vector.extract_strided_slice %184 {offsets = [0, 32], sizes = [8, 32], strides = [1, 1]} : vector<8x128xf32> to vector<8x32xf32>
    %191 = arith.mulf %190, %150 : vector<8x32xf32>
    %192 = vector.extract_strided_slice %184 {offsets = [0, 0], sizes = [8, 32], strides = [1, 1]} : vector<8x128xf32> to vector<8x32xf32>
    %193 = arith.mulf %192, %189 : vector<8x32xf32>
    %194 = arith.addf %191, %193 : vector<8x32xf32>
    %195 = vector.extract_strided_slice %184 {offsets = [0, 64], sizes = [8, 32], strides = [1, 1]} : vector<8x128xf32> to vector<8x32xf32>
    %196 = math.tanh %194 : vector<8x32xf32>
    %197 = arith.mulf %195, %196 : vector<8x32xf32>
    %198 = vector.extract_strided_slice %177 {offsets = [0, 128], sizes = [8, 128], strides = [1, 1]} : vector<8x256xf32> to vector<8x128xf32>
    %199 = vector.extract_strided_slice %10 {offsets = [4, 0, 0], sizes = [1, 8, 128], strides = [1, 1, 1]} : vector<8x8x128xf32> to vector<1x8x128xf32>
    %200 = vector.shape_cast %199 : vector<1x8x128xf32> to vector<8x128xf32>
    %201 = arith.addf %198, %200 : vector<8x128xf32>
    %202 = arith.negf %201 : vector<8x128xf32>
    %203 = math.exp %202 : vector<8x128xf32>
    %cst_43 = arith.constant 1.000000e+00 : f32
    %204 = vector.broadcast %cst_43 : f32 to vector<8x128xf32>
    %205 = arith.addf %204, %203 : vector<8x128xf32>
    %206 = arith.divf %204, %205 : vector<8x128xf32>
    %207 = vector.extract_strided_slice %206 {offsets = [0, 96], sizes = [8, 32], strides = [1, 1]} : vector<8x128xf32> to vector<8x32xf32>
    %cst_44 = arith.constant 2.000000e+00 : f32
    %208 = vector.broadcast %cst_44 : f32 to vector<8x32xf32>
    %209 = arith.mulf %208, %207 : vector<8x32xf32>
    %cst_45 = arith.constant 1.000000e+00 : f32
    %210 = vector.broadcast %cst_45 : f32 to vector<8x32xf32>
    %211 = arith.subf %209, %210 : vector<8x32xf32>
    %212 = vector.extract_strided_slice %206 {offsets = [0, 32], sizes = [8, 32], strides = [1, 1]} : vector<8x128xf32> to vector<8x32xf32>
    %213 = arith.mulf %212, %172 : vector<8x32xf32>
    %214 = vector.extract_strided_slice %206 {offsets = [0, 0], sizes = [8, 32], strides = [1, 1]} : vector<8x128xf32> to vector<8x32xf32>
    %215 = arith.mulf %214, %211 : vector<8x32xf32>
    %216 = arith.addf %213, %215 : vector<8x32xf32>
    %217 = vector.extract_strided_slice %206 {offsets = [0, 64], sizes = [8, 32], strides = [1, 1]} : vector<8x128xf32> to vector<8x32xf32>
    %218 = math.tanh %216 : vector<8x32xf32>
    %219 = arith.mulf %217, %218 : vector<8x32xf32>
    %220 = tpu.concatenate %219, %197 in 1 : vector<8x32xf32>, vector<8x32xf32> -> vector<8x64xf32>
    %cst_46 = arith.constant dense<0.000000e+00> : vector<8x256xf32>
    %221 = tpu.matmul %220, %11, %cst_46 {dimension_numbers = #tpu.dot_dimension_numbers<[1], [0], [0], [1], [0, 0, 1, 1], [], []>} : vector<8x64xf32>, vector<64x256xf32>, vector<8x256xf32> -> vector<8x256xf32>
    %222 = vector.extract_strided_slice %221 {offsets = [0, 0], sizes = [8, 128], strides = [1, 1]} : vector<8x256xf32> to vector<8x128xf32>
    %223 = arith.addf %222, %5 : vector<8x128xf32>
    %224 = arith.negf %223 : vector<8x128xf32>
    %225 = math.exp %224 : vector<8x128xf32>
    %cst_47 = arith.constant 1.000000e+00 : f32
    %226 = vector.broadcast %cst_47 : f32 to vector<8x128xf32>
    %227 = arith.addf %226, %225 : vector<8x128xf32>
    %228 = arith.divf %226, %227 : vector<8x128xf32>
    %229 = vector.extract_strided_slice %228 {offsets = [0, 96], sizes = [8, 32], strides = [1, 1]} : vector<8x128xf32> to vector<8x32xf32>
    %cst_48 = arith.constant 2.000000e+00 : f32
    %230 = vector.broadcast %cst_48 : f32 to vector<8x32xf32>
    %231 = arith.mulf %230, %229 : vector<8x32xf32>
    %cst_49 = arith.constant 1.000000e+00 : f32
    %232 = vector.broadcast %cst_49 : f32 to vector<8x32xf32>
    %233 = arith.subf %231, %232 : vector<8x32xf32>
    %234 = vector.extract_strided_slice %228 {offsets = [0, 32], sizes = [8, 32], strides = [1, 1]} : vector<8x128xf32> to vector<8x32xf32>
    %235 = arith.mulf %234, %194 : vector<8x32xf32>
    %236 = vector.extract_strided_slice %228 {offsets = [0, 0], sizes = [8, 32], strides = [1, 1]} : vector<8x128xf32> to vector<8x32xf32>
    %237 = arith.mulf %236, %233 : vector<8x32xf32>
    %238 = arith.addf %235, %237 : vector<8x32xf32>
    %239 = vector.extract_strided_slice %228 {offsets = [0, 64], sizes = [8, 32], strides = [1, 1]} : vector<8x128xf32> to vector<8x32xf32>
    %240 = math.tanh %238 : vector<8x32xf32>
    %241 = arith.mulf %239, %240 : vector<8x32xf32>
    %242 = vector.extract_strided_slice %221 {offsets = [0, 128], sizes = [8, 128], strides = [1, 1]} : vector<8x256xf32> to vector<8x128xf32>
    %243 = vector.extract_strided_slice %10 {offsets = [5, 0, 0], sizes = [1, 8, 128], strides = [1, 1, 1]} : vector<8x8x128xf32> to vector<1x8x128xf32>
    %244 = vector.shape_cast %243 : vector<1x8x128xf32> to vector<8x128xf32>
    %245 = arith.addf %242, %244 : vector<8x128xf32>
    %246 = arith.negf %245 : vector<8x128xf32>
    %247 = math.exp %246 : vector<8x128xf32>
    %cst_50 = arith.constant 1.000000e+00 : f32
    %248 = vector.broadcast %cst_50 : f32 to vector<8x128xf32>
    %249 = arith.addf %248, %247 : vector<8x128xf32>
    %250 = arith.divf %248, %249 : vector<8x128xf32>
    %251 = vector.extract_strided_slice %250 {offsets = [0, 96], sizes = [8, 32], strides = [1, 1]} : vector<8x128xf32> to vector<8x32xf32>
    %cst_51 = arith.constant 2.000000e+00 : f32
    %252 = vector.broadcast %cst_51 : f32 to vector<8x32xf32>
    %253 = arith.mulf %252, %251 : vector<8x32xf32>
    %cst_52 = arith.constant 1.000000e+00 : f32
    %254 = vector.broadcast %cst_52 : f32 to vector<8x32xf32>
    %255 = arith.subf %253, %254 : vector<8x32xf32>
    %256 = vector.extract_strided_slice %250 {offsets = [0, 32], sizes = [8, 32], strides = [1, 1]} : vector<8x128xf32> to vector<8x32xf32>
    %257 = arith.mulf %256, %216 : vector<8x32xf32>
    %258 = vector.extract_strided_slice %250 {offsets = [0, 0], sizes = [8, 32], strides = [1, 1]} : vector<8x128xf32> to vector<8x32xf32>
    %259 = arith.mulf %258, %255 : vector<8x32xf32>
    %260 = arith.addf %257, %259 : vector<8x32xf32>
    %261 = vector.extract_strided_slice %250 {offsets = [0, 64], sizes = [8, 32], strides = [1, 1]} : vector<8x128xf32> to vector<8x32xf32>
    %262 = math.tanh %260 : vector<8x32xf32>
    %263 = arith.mulf %261, %262 : vector<8x32xf32>
    %264 = tpu.concatenate %263, %241 in 1 : vector<8x32xf32>, vector<8x32xf32> -> vector<8x64xf32>
    %cst_53 = arith.constant dense<0.000000e+00> : vector<8x256xf32>
    %265 = tpu.matmul %264, %11, %cst_53 {dimension_numbers = #tpu.dot_dimension_numbers<[1], [0], [0], [1], [0, 0, 1, 1], [], []>} : vector<8x64xf32>, vector<64x256xf32>, vector<8x256xf32> -> vector<8x256xf32>
    %266 = vector.extract_strided_slice %265 {offsets = [0, 0], sizes = [8, 128], strides = [1, 1]} : vector<8x256xf32> to vector<8x128xf32>
    %267 = arith.addf %266, %5 : vector<8x128xf32>
    %268 = arith.negf %267 : vector<8x128xf32>
    %269 = math.exp %268 : vector<8x128xf32>
    %cst_54 = arith.constant 1.000000e+00 : f32
    %270 = vector.broadcast %cst_54 : f32 to vector<8x128xf32>
    %271 = arith.addf %270, %269 : vector<8x128xf32>
    %272 = arith.divf %270, %271 : vector<8x128xf32>
    %273 = vector.extract_strided_slice %272 {offsets = [0, 96], sizes = [8, 32], strides = [1, 1]} : vector<8x128xf32> to vector<8x32xf32>
    %cst_55 = arith.constant 2.000000e+00 : f32
    %274 = vector.broadcast %cst_55 : f32 to vector<8x32xf32>
    %275 = arith.mulf %274, %273 : vector<8x32xf32>
    %cst_56 = arith.constant 1.000000e+00 : f32
    %276 = vector.broadcast %cst_56 : f32 to vector<8x32xf32>
    %277 = arith.subf %275, %276 : vector<8x32xf32>
    %278 = vector.extract_strided_slice %272 {offsets = [0, 32], sizes = [8, 32], strides = [1, 1]} : vector<8x128xf32> to vector<8x32xf32>
    %279 = arith.mulf %278, %238 : vector<8x32xf32>
    %280 = vector.extract_strided_slice %272 {offsets = [0, 0], sizes = [8, 32], strides = [1, 1]} : vector<8x128xf32> to vector<8x32xf32>
    %281 = arith.mulf %280, %277 : vector<8x32xf32>
    %282 = arith.addf %279, %281 : vector<8x32xf32>
    %283 = vector.extract_strided_slice %272 {offsets = [0, 64], sizes = [8, 32], strides = [1, 1]} : vector<8x128xf32> to vector<8x32xf32>
    %284 = math.tanh %282 : vector<8x32xf32>
    %285 = arith.mulf %283, %284 : vector<8x32xf32>
    %286 = vector.extract_strided_slice %265 {offsets = [0, 128], sizes = [8, 128], strides = [1, 1]} : vector<8x256xf32> to vector<8x128xf32>
    %287 = vector.extract_strided_slice %10 {offsets = [6, 0, 0], sizes = [1, 8, 128], strides = [1, 1, 1]} : vector<8x8x128xf32> to vector<1x8x128xf32>
    %288 = vector.shape_cast %287 : vector<1x8x128xf32> to vector<8x128xf32>
    %289 = arith.addf %286, %288 : vector<8x128xf32>
    %290 = arith.negf %289 : vector<8x128xf32>
    %291 = math.exp %290 : vector<8x128xf32>
    %cst_57 = arith.constant 1.000000e+00 : f32
    %292 = vector.broadcast %cst_57 : f32 to vector<8x128xf32>
    %293 = arith.addf %292, %291 : vector<8x128xf32>
    %294 = arith.divf %292, %293 : vector<8x128xf32>
    %295 = vector.extract_strided_slice %294 {offsets = [0, 96], sizes = [8, 32], strides = [1, 1]} : vector<8x128xf32> to vector<8x32xf32>
    %cst_58 = arith.constant 2.000000e+00 : f32
    %296 = vector.broadcast %cst_58 : f32 to vector<8x32xf32>
    %297 = arith.mulf %296, %295 : vector<8x32xf32>
    %cst_59 = arith.constant 1.000000e+00 : f32
    %298 = vector.broadcast %cst_59 : f32 to vector<8x32xf32>
    %299 = arith.subf %297, %298 : vector<8x32xf32>
    %300 = vector.extract_strided_slice %294 {offsets = [0, 32], sizes = [8, 32], strides = [1, 1]} : vector<8x128xf32> to vector<8x32xf32>
    %301 = arith.mulf %300, %260 : vector<8x32xf32>
    %302 = vector.extract_strided_slice %294 {offsets = [0, 0], sizes = [8, 32], strides = [1, 1]} : vector<8x128xf32> to vector<8x32xf32>
    %303 = arith.mulf %302, %299 : vector<8x32xf32>
    %304 = arith.addf %301, %303 : vector<8x32xf32>
    %305 = vector.extract_strided_slice %294 {offsets = [0, 64], sizes = [8, 32], strides = [1, 1]} : vector<8x128xf32> to vector<8x32xf32>
    %306 = math.tanh %304 : vector<8x32xf32>
    %307 = arith.mulf %305, %306 : vector<8x32xf32>
    %308 = tpu.concatenate %307, %285 in 1 : vector<8x32xf32>, vector<8x32xf32> -> vector<8x64xf32>
    %cst_60 = arith.constant dense<0.000000e+00> : vector<8x256xf32>
    %309 = tpu.matmul %308, %11, %cst_60 {dimension_numbers = #tpu.dot_dimension_numbers<[1], [0], [0], [1], [0, 0, 1, 1], [], []>} : vector<8x64xf32>, vector<64x256xf32>, vector<8x256xf32> -> vector<8x256xf32>
    %310 = vector.extract_strided_slice %309 {offsets = [0, 0], sizes = [8, 128], strides = [1, 1]} : vector<8x256xf32> to vector<8x128xf32>
    %311 = arith.addf %310, %5 : vector<8x128xf32>
    %312 = arith.negf %311 : vector<8x128xf32>
    %313 = math.exp %312 : vector<8x128xf32>
    %cst_61 = arith.constant 1.000000e+00 : f32
    %314 = vector.broadcast %cst_61 : f32 to vector<8x128xf32>
    %315 = arith.addf %314, %313 : vector<8x128xf32>
    %316 = arith.divf %314, %315 : vector<8x128xf32>
    %317 = vector.extract_strided_slice %316 {offsets = [0, 96], sizes = [8, 32], strides = [1, 1]} : vector<8x128xf32> to vector<8x32xf32>
    %cst_62 = arith.constant 2.000000e+00 : f32
    %318 = vector.broadcast %cst_62 : f32 to vector<8x32xf32>
    %319 = arith.mulf %318, %317 : vector<8x32xf32>
    %cst_63 = arith.constant 1.000000e+00 : f32
    %320 = vector.broadcast %cst_63 : f32 to vector<8x32xf32>
    %321 = arith.subf %319, %320 : vector<8x32xf32>
    %322 = vector.extract_strided_slice %316 {offsets = [0, 32], sizes = [8, 32], strides = [1, 1]} : vector<8x128xf32> to vector<8x32xf32>
    %323 = arith.mulf %322, %282 : vector<8x32xf32>
    %324 = vector.extract_strided_slice %316 {offsets = [0, 0], sizes = [8, 32], strides = [1, 1]} : vector<8x128xf32> to vector<8x32xf32>
    %325 = arith.mulf %324, %321 : vector<8x32xf32>
    %326 = arith.addf %323, %325 : vector<8x32xf32>
    %327 = vector.extract_strided_slice %316 {offsets = [0, 64], sizes = [8, 32], strides = [1, 1]} : vector<8x128xf32> to vector<8x32xf32>
    %328 = math.tanh %326 : vector<8x32xf32>
    %329 = arith.mulf %327, %328 : vector<8x32xf32>
    %330 = vector.extract_strided_slice %309 {offsets = [0, 128], sizes = [8, 128], strides = [1, 1]} : vector<8x256xf32> to vector<8x128xf32>
    %331 = vector.extract_strided_slice %10 {offsets = [7, 0, 0], sizes = [1, 8, 128], strides = [1, 1, 1]} : vector<8x8x128xf32> to vector<1x8x128xf32>
    %332 = vector.shape_cast %331 : vector<1x8x128xf32> to vector<8x128xf32>
    %333 = arith.addf %330, %332 : vector<8x128xf32>
    %334 = arith.negf %333 : vector<8x128xf32>
    %335 = math.exp %334 : vector<8x128xf32>
    %cst_64 = arith.constant 1.000000e+00 : f32
    %336 = vector.broadcast %cst_64 : f32 to vector<8x128xf32>
    %337 = arith.addf %336, %335 : vector<8x128xf32>
    %338 = arith.divf %336, %337 : vector<8x128xf32>
    %339 = vector.extract_strided_slice %338 {offsets = [0, 96], sizes = [8, 32], strides = [1, 1]} : vector<8x128xf32> to vector<8x32xf32>
    %cst_65 = arith.constant 2.000000e+00 : f32
    %340 = vector.broadcast %cst_65 : f32 to vector<8x32xf32>
    %341 = arith.mulf %340, %339 : vector<8x32xf32>
    %cst_66 = arith.constant 1.000000e+00 : f32
    %342 = vector.broadcast %cst_66 : f32 to vector<8x32xf32>
    %343 = arith.subf %341, %342 : vector<8x32xf32>
    %344 = vector.extract_strided_slice %338 {offsets = [0, 32], sizes = [8, 32], strides = [1, 1]} : vector<8x128xf32> to vector<8x32xf32>
    %345 = arith.mulf %344, %304 : vector<8x32xf32>
    %346 = vector.extract_strided_slice %338 {offsets = [0, 0], sizes = [8, 32], strides = [1, 1]} : vector<8x128xf32> to vector<8x32xf32>
    %347 = arith.mulf %346, %343 : vector<8x32xf32>
    %348 = arith.addf %345, %347 : vector<8x32xf32>
    %349 = vector.extract_strided_slice %338 {offsets = [0, 64], sizes = [8, 32], strides = [1, 1]} : vector<8x128xf32> to vector<8x32xf32>
    %350 = math.tanh %348 : vector<8x32xf32>
    %351 = arith.mulf %349, %350 : vector<8x32xf32>
    %352 = tpu.concatenate %351, %329 in 1 : vector<8x32xf32>, vector<8x32xf32> -> vector<8x64xf32>
    %cst_67 = arith.constant dense<0.000000e+00> : vector<8x256xf32>
    %353 = tpu.matmul %352, %11, %cst_67 {dimension_numbers = #tpu.dot_dimension_numbers<[1], [0], [0], [1], [0, 0, 1, 1], [], []>} : vector<8x64xf32>, vector<64x256xf32>, vector<8x256xf32> -> vector<8x256xf32>
    %354 = vector.extract_strided_slice %353 {offsets = [0, 0], sizes = [8, 128], strides = [1, 1]} : vector<8x256xf32> to vector<8x128xf32>
    %355 = arith.addf %354, %5 : vector<8x128xf32>
    %356 = arith.negf %355 : vector<8x128xf32>
    %357 = math.exp %356 : vector<8x128xf32>
    %cst_68 = arith.constant 1.000000e+00 : f32
    %358 = vector.broadcast %cst_68 : f32 to vector<8x128xf32>
    %359 = arith.addf %358, %357 : vector<8x128xf32>
    %360 = arith.divf %358, %359 : vector<8x128xf32>
    %361 = vector.extract_strided_slice %360 {offsets = [0, 96], sizes = [8, 32], strides = [1, 1]} : vector<8x128xf32> to vector<8x32xf32>
    %cst_69 = arith.constant 2.000000e+00 : f32
    %362 = vector.broadcast %cst_69 : f32 to vector<8x32xf32>
    %363 = arith.mulf %362, %361 : vector<8x32xf32>
    %cst_70 = arith.constant 1.000000e+00 : f32
    %364 = vector.broadcast %cst_70 : f32 to vector<8x32xf32>
    %365 = arith.subf %363, %364 : vector<8x32xf32>
    %366 = vector.extract_strided_slice %360 {offsets = [0, 32], sizes = [8, 32], strides = [1, 1]} : vector<8x128xf32> to vector<8x32xf32>
    %367 = arith.mulf %366, %326 : vector<8x32xf32>
    %368 = vector.extract_strided_slice %360 {offsets = [0, 0], sizes = [8, 32], strides = [1, 1]} : vector<8x128xf32> to vector<8x32xf32>
    %369 = arith.mulf %368, %365 : vector<8x32xf32>
    %370 = arith.addf %367, %369 : vector<8x32xf32>
    %371 = vector.extract_strided_slice %360 {offsets = [0, 64], sizes = [8, 32], strides = [1, 1]} : vector<8x128xf32> to vector<8x32xf32>
    %372 = math.tanh %370 : vector<8x32xf32>
    %373 = arith.mulf %371, %372 : vector<8x32xf32>
    %c0_71 = arith.constant 0 : index
    %c0_72 = arith.constant 0 : index
    %374 = vector.load %arg4[%c0_71, %c0_72] : memref<80x32xf32, #tpu.memory_space<vmem>>, vector<80x32xf32>
    %375 = vector.extract_strided_slice %374 {offsets = [0, 0], sizes = [32, 32], strides = [1, 1]} : vector<80x32xf32> to vector<32x32xf32>
    %cst_73 = arith.constant dense<0.000000e+00> : vector<8x32xf32>
    %376 = tpu.matmul %373, %375, %cst_73 {dimension_numbers = #tpu.dot_dimension_numbers<[1], [0], [0], [1], [0, 0, 1, 1], [], []>} : vector<8x32xf32>, vector<32x32xf32>, vector<8x32xf32> -> vector<8x32xf32>
    %377 = vector.extract_strided_slice %374 {offsets = [32, 0], sizes = [1, 32], strides = [1, 1]} : vector<80x32xf32> to vector<1x32xf32>
    %378 = vector.broadcast %377 : vector<1x32xf32> to vector<8x32xf32>
    %379 = arith.addf %376, %378 : vector<8x32xf32>
    %cst_74 = arith.constant 0.000000e+00 : f32
    %380 = vector.broadcast %cst_74 : f32 to vector<8x32xf32>
    %381 = arith.maximumf %379, %380 : vector<8x32xf32>
    %382 = vector.extract_strided_slice %374 {offsets = [40, 0], sizes = [32, 32], strides = [1, 1]} : vector<80x32xf32> to vector<32x32xf32>
    %cst_75 = arith.constant dense<0.000000e+00> : vector<8x32xf32>
    %383 = tpu.matmul %381, %382, %cst_75 {dimension_numbers = #tpu.dot_dimension_numbers<[1], [0], [0], [1], [0, 0, 1, 1], [], []>} : vector<8x32xf32>, vector<32x32xf32>, vector<8x32xf32> -> vector<8x32xf32>
    %384 = vector.extract_strided_slice %374 {offsets = [72, 0], sizes = [1, 32], strides = [1, 1]} : vector<80x32xf32> to vector<1x32xf32>
    %385 = vector.broadcast %384 : vector<1x32xf32> to vector<8x32xf32>
    %386 = arith.addf %383, %385 : vector<8x32xf32>
    %cst_76 = arith.constant 0.000000e+00 : f32
    %387 = vector.broadcast %cst_76 : f32 to vector<8x32xf32>
    %388 = tpu.concatenate %386, %351, %373, %387 in 1 : vector<8x32xf32>, vector<8x32xf32>, vector<8x32xf32>, vector<8x32xf32> -> vector<8x128xf32>
    %c0_77 = arith.constant 0 : index
    %c0_78 = arith.constant 0 : index
    %389 = vector.load %arg5[%c0_77, %c0_78] : memref<8x128xf32, #tpu.memory_space<vmem>>, vector<8x128xf32>
    tpu.vector_store %arg5[%c0_77, %c0_78], %388 {strides = array<i32>} : memref<8x128xf32, #tpu.memory_space<vmem>>, vector<8x128xf32>,
    return
  }
}

</mosaic_0001>

<llo_original>
// kernel: temporal_regime_encoder.1
$region0: #{temporal_regime_encoder.1}
  #allocation0 [shape = 'u32[]', space=smem, size = 0x4, offset = 0x4, fixed_abs, tag = 'smem constant byte address 0x4 - core index']
  #allocation1 [shape = 'u32[72,128]{1,0:T(1,128)}', space=vmem, size = 0x9000, scoped, tag = 'internal scratch']
  %s0 = inlined_call_operand.vmem [shape: f32[64,8], index: 0, kind: input, shape index: {}]
  %s1 = inlined_call_operand.vmem [shape: f32[10,128], index: 1, kind: input, shape index: {}]
  %s2 = inlined_call_operand.vmem [shape: f32[64,256], index: 2, kind: input, shape index: {}]
  %s3 = inlined_call_operand.vmem [shape: f32[4,8,32], index: 3, kind: input, shape index: {}]
  %s4 = inlined_call_operand.vmem [shape: f32[80,32], index: 4, kind: input, shape index: {}]
  %s5 = inlined_call_operand.vmem [shape: f32[8,128], index: 5, kind: output, shape index: {}]
  %s6 = sld [smem:[#allocation0]]
  $region30: #{temporal_regime_encoder.1} parent=0
    _
  %s8 = ssub.s32 1, %s6
  %s9 = scalar_select 0, %s8, %s6
  // Predicated region
  $region2: #{temporal_regime_encoder.1} parent=0 // pred_check
    _
  $region3: #{temporal_regime_encoder.1} parent=0 // pred_check_branch
    %11 = sbr.rel (0) target = $region5
  $region4: #{temporal_regime_encoder.1} parent=0 // pred_region
    _
  $region5: #{temporal_regime_encoder.1} parent=0 // pred_fallthru
    _
  // Predicated region
  $region6: #{temporal_regime_encoder.1} parent=0 // pred_check
    _
  $region7: #{temporal_regime_encoder.1} parent=0 // pred_check_branch
    %13 = sbr.rel (0) target = $region9
  $region8: #{temporal_regime_encoder.1} parent=0 // pred_region
    _
  $region9: #{temporal_regime_encoder.1} parent=0 // pred_fallthru
    _
  // Predicated region
  $region10: #{temporal_regime_encoder.1} parent=0 // pred_check
    _
  $region11: #{temporal_regime_encoder.1} parent=0 // pred_check_branch
    %15 = sbr.rel (0) target = $region13
  $region12: #{temporal_regime_encoder.1} parent=0 // pred_region
    _
  $region13: #{temporal_regime_encoder.1} parent=0 // pred_fallthru
    _
  // Predicated region
  $region14: #{temporal_regime_encoder.1} parent=0 // pred_check
    _
  $region15: #{temporal_regime_encoder.1} parent=0 // pred_check_branch
    %17 = sbr.rel (0) target = $region17
  $region16: #{temporal_regime_encoder.1} parent=0 // pred_region
    _
  $region17: #{temporal_regime_encoder.1} parent=0 // pred_fallthru
    _
  // Predicated region
  $region18: #{temporal_regime_encoder.1} parent=0 // pred_check
    _
  $region19: #{temporal_regime_encoder.1} parent=0 // pred_check_branch
    %19 = sbr.rel (0) target = $region21
  $region20: #{temporal_regime_encoder.1} parent=0 // pred_region
    _
  $region21: #{temporal_regime_encoder.1} parent=0 // pred_fallthru
    _
  %v20 = vld [vmem:[%s1] sm:$0xff]
  %v21 = vld [vmem:[%s1 + $0x8] sm:$0x3]
  %v22 = vperm.slane %v21, 1
  %v23 = vld [vmem:[%s0] sm:$0xff]
  %v24 = vld [vmem:[%s0 + $0x8] sm:$0xff]
  %v25 = vld [vmem:[%s0 + $0x10] sm:$0xff]
  %v26 = vld [vmem:[%s0 + $0x18] sm:$0xff]
  %v27 = vld [vmem:[%s0 + $0x20] sm:$0xff]
  %v28 = vld [vmem:[%s0 + $0x28] sm:$0xff]
  %v29 = vld [vmem:[%s0 + $0x30] sm:$0xff]
  %v30 = vld [vmem:[%s0 + $0x38] sm:$0xff]
  %v31 = vperm.slane %v21, 0
  %vm32 = vcmask 64512
  %v34 = vsel %vm32, %v23, 0
  %v37 = vsel %vm32, %v24, 0
  %v40 = vsel %vm32, %v25, 0
  %v43 = vsel %vm32, %v26, 0
  %v46 = vsel %vm32, %v27, 0
  %v49 = vsel %vm32, %v28, 0
  %v52 = vsel %vm32, %v29, 0
  %v55 = vsel %vm32, %v30, 0
  %57 = vmatpush.msra.mxu0 0.0
  %58 = vmatpush.msra.mxu0 0.0
  %59 = vmatpush.msra.mxu0 0.0
  %60 = vmatpush.msra.mxu0 0.0
  %61 = vmatpush.msra.mxu0 0.0
  %62 = vmatpush.msra.mxu0 0.0
  %63 = vmatpush.msra.mxu0 0.0
  %64 = vmatpush.msra.mxu0 0.0
  %65 = vmatpush.msra.mxu0 0.0
  %66 = vmatpush.msra.mxu0 0.0
  %67 = vmatpush.msra.mxu0 0.0
  %68 = vmatpush.msra.mxu0 0.0
  %69 = vmatpush.msra.mxu0 0.0
  %70 = vmatpush.msra.mxu0 0.0
  %71 = vmatpush.msra.mxu0 0.0
  %72 = vmatpush.msra.mxu0 %v20
  %73 = vmatmul.f32.gmra.mxu0 %v34
  %v74 = vpop.f32.mrf.mxu0
  %v75 = vadd.f32 %v31, %v74
  %76 = vmatmul.f32.gmra.mxu0 %v37
  %v77 = vpop.f32.mrf.mxu0
  %v78 = vadd.f32 %v31, %v77
  %79 = vmatmul.f32.gmra.mxu0 %v40
  %v80 = vpop.f32.mrf.mxu0
  %v81 = vadd.f32 %v31, %v80
  %82 = vmatmul.f32.gmra.mxu0 %v43
  %v83 = vpop.f32.mrf.mxu0
  %v84 = vadd.f32 %v31, %v83
  %85 = vmatmul.f32.gmra.mxu0 %v46
  %v86 = vpop.f32.mrf.mxu0
  %v87 = vadd.f32 %v31, %v86
  %88 = vmatmul.f32.gmra.mxu0 %v49
  %v89 = vpop.f32.mrf.mxu0
  %v90 = vadd.f32 %v31, %v89
  %91 = vmatmul.f32.gmra.mxu0 %v52
  %v92 = vpop.f32.mrf.mxu0
  %v93 = vadd.f32 %v31, %v92
  %94 = vmatmul.f32.gmra.mxu0 %v55
  %v95 = vpop.f32.mrf.mxu0
  %v96 = vadd.f32 %v31, %v95
  %97 = vdwg.mxu0
  %v98 = vld [vmem:[%s2] sm:$0xff]
  %v99 = vld [vmem:[%s2 + $0x8] sm:$0xff]
  %v100 = vld [vmem:[%s2 + $0x10] sm:$0xff]
  %v101 = vld [vmem:[%s2 + $0x18] sm:$0xff]
  %v102 = vld [vmem:[%s2 + $0x20] sm:$0xff]
  %v103 = vld [vmem:[%s2 + $0x28] sm:$0xff]
  %v104 = vld [vmem:[%s2 + $0x30] sm:$0xff]
  %v105 = vld [vmem:[%s2 + $0x38] sm:$0xff]
  %v106 = vld [vmem:[%s2 + $0x40] sm:$0xff]
  %v107 = vld [vmem:[%s2 + $0x48] sm:$0xff]
  %v108 = vld [vmem:[%s2 + $0x50] sm:$0xff]
  %v109 = vld [vmem:[%s2 + $0x58] sm:$0xff]
  %v110 = vld [vmem:[%s2 + $0x60] sm:$0xff]
  %v111 = vld [vmem:[%s2 + $0x68] sm:$0xff]
  %v112 = vld [vmem:[%s2 + $0x70] sm:$0xff]
  %v113 = vld [vmem:[%s2 + $0x78] sm:$0xff]
  %v114 = vld [vmem:[%s3] sm:$0xff]
  %s115 = scalar_lea.vmem %s3, 8
  %v116 = vld [vmem:[%s115] sm:$0xff]
  %s117 = scalar_lea.vmem %s3, 16
  %v118 = vld [vmem:[%s117] sm:$0xff]
  %s119 = scalar_lea.vmem %s3, 24
  %v120 = vld [vmem:[%s119] sm:$0xff]
  %122 = vrot.lane.b32.xlu0 %v116, 32
  %v123 = vpop.permute.xlu0 %122
  %vm125 = vcmask 261120
  %v126 = vsel %vm125, %v114, %v123
  %vm127 = vcmask 523264
  %v129 = vsel %vm127, %v126, 0
  %131 = vmatpush.msra.mxu0 0.0
  %132 = vmatpush.msra.mxu0 0.0
  %133 = vmatpush.msra.mxu0 0.0
  %134 = vmatpush.msra.mxu0 0.0
  %135 = vmatpush.msra.mxu0 0.0
  %136 = vmatpush.msra.mxu0 0.0
  %137 = vmatpush.msra.mxu0 0.0
  %138 = vmatpush.msra.mxu0 0.0
  %139 = vmatpush.msra.mxu0 %v113
  %140 = vmatpush.msra.mxu0 %v111
  %141 = vmatpush.msra.mxu0 %v109
  %142 = vmatpush.msra.mxu0 %v107
  %143 = vmatpush.msra.mxu0 %v105
  %144 = vmatpush.msra.mxu0 %v103
  %145 = vmatpush.msra.mxu0 %v101
  %146 = vmatpush.msra.mxu0 %v99
  %147 = vmatmul.f32.gmra.mxu0 %v129
  %v148 = vpop.f32.mrf.mxu0
  %v149 = vadd.f32 0.0, %v148
  %150 = vdwg.mxu0
  %v151 = vadd.f32 %v149, %v75
  %v152 = vxor.u32 %v151, 2147483648
  %v153 = vmul.f32 %v152, 1.442695
  %v154 = vpow.pop %v153
  %v155 = vadd.f32 %v154, 1.0
  %v156 = vrcp.pop %v155
  %v157 = vmul.f32 %v155, %v156
  %v158 = vsub.f32 1.0, %v157
  %v159 = vmul.f32 %v156, %v158
  %v160 = vadd.f32 %v156, %v159
  %vm161 = vweird.f32 %v155
  %vm162 = vweird.f32 %v156
  %vm163 = vmor %vm161, %vm162
  %v164 = vsel %vm163, %v156, %v160
  %v165 = vand.u32 2147483647, %v155
  %vm166 = vcmp.eq.f32.partialorder %v165, 8.507059e+37
  %v167 = vand.u32 %v155, 2147483648
  %v168 = vor.u32 1.1754944e-38, %v167
  %v169 = vsel %vm166, %v168, %v164
  %v170 = vmul.f32 1.0, %v169
  %v171 = vmul.f32 %v170, 2.0
  %v172 = vsub.f32 %v171, 1.0
  %174 = vrot.lane.b32.xlu0 %v118, 32
  %v175 = vpop.permute.xlu0 %174
  %v177 = vmul.f32 %v170, %v175
  %179 = vrot.lane.b32.xlu0 %v172, 32
  %v180 = vpop.permute.xlu0 %179
  %v182 = vmul.f32 %v170, %v180
  %184 = vrot.lane.b32.xlu0 %v182, 32
  %v185 = vpop.permute.xlu0 %184
  %v187 = vadd.f32 %v177, %v185
  %v188 = vtanh.pop %v187
  %190 = vrot.lane.b32.xlu0 %v188, 32
  %v191 = vpop.permute.xlu0 %190
  %v193 = vmul.f32 %v170, %v191
  %195 = vrot.lane.b32.xlu0 %v193, 64
  %v196 = vpop.permute.xlu0 %195
  %v198 = vsel %vm125, %v196, %v123
  %v200 = vsel %vm127, %v198, 0
  %202 = vmatpush.msra.mxu0 0.0
  %203 = vmatpush.msra.mxu0 0.0
  %204 = vmatpush.msra.mxu0 0.0
  %205 = vmatpush.msra.mxu0 0.0
  %206 = vmatpush.msra.mxu0 0.0
  %207 = vmatpush.msra.mxu0 0.0
  %208 = vmatpush.msra.mxu0 0.0
  %209 = vmatpush.msra.mxu0 0.0
  %210 = vmatpush.msra.mxu0 %v112
  %211 = vmatpush.msra.mxu0 %v110
  %212 = vmatpush.msra.mxu0 %v108
  %213 = vmatpush.msra.mxu0 %v106
  %214 = vmatpush.msra.mxu0 %v104
  %215 = vmatpush.msra.mxu0 %v102
  %216 = vmatpush.msra.mxu0 %v100
  %217 = vmatpush.msra.mxu0 %v98
  %218 = vmatmul.f32.gmra.mxu0 %v200
  %v219 = vpop.f32.mrf.mxu0
  %v220 = vadd.f32 0.0, %v219
  %221 = vdwg.mxu0
  %222 = vmatpush.msra.mxu0 0.0
  %223 = vmatpush.msra.mxu0 0.0
  %224 = vmatpush.msra.mxu0 0.0
  %225 = vmatpush.msra.mxu0 0.0
  %226 = vmatpush.msra.mxu0 0.0
  %227 = vmatpush.msra.mxu0 0.0
  %228 = vmatpush.msra.mxu0 0.0
  %229 = vmatpush.msra.mxu0 0.0
  %230 = vmatpush.msra.mxu0 %v113
  %231 = vmatpush.msra.mxu0 %v111
  %232 = vmatpush.msra.mxu0 %v109
  %233 = vmatpush.msra.mxu0 %v107
  %234 = vmatpush.msra.mxu0 %v105
  %235 = vmatpush.msra.mxu0 %v103
  %236 = vmatpush.msra.mxu0 %v101
  %237 = vmatpush.msra.mxu0 %v99
  %238 = vmatmul.f32.gmra.mxu0 %v200
  %v239 = vpop.f32.mrf.mxu0
  %v240 = vadd.f32 0.0, %v239
  %241 = vdwg.mxu0
  %v242 = vadd.f32 %v220, %v22
  %v243 = vxor.u32 %v242, 2147483648
  %v244 = vmul.f32 %v243, 1.442695
  %v245 = vpow.pop %v244
  %v246 = vadd.f32 %v245, 1.0
  %v247 = vrcp.pop %v246
  %v248 = vmul.f32 %v246, %v247
  %v249 = vsub.f32 1.0, %v248
  %v250 = vmul.f32 %v247, %v249
  %v251 = vadd.f32 %v247, %v250
  %vm252 = vweird.f32 %v246
  %vm253 = vweird.f32 %v247
  %vm254 = vmor %vm252, %vm253
  %v255 = vsel %vm254, %v247, %v251
  %v256 = vand.u32 2147483647, %v246
  %vm257 = vcmp.eq.f32.partialorder %v256, 8.507059e+37
  %v258 = vand.u32 %v246, 2147483648
  %v259 = vor.u32 1.1754944e-38, %v258
  %v260 = vsel %vm257, %v259, %v255
  %v261 = vmul.f32 1.0, %v260
  %v262 = vmul.f32 %v261, 2.0
  %v263 = vsub.f32 %v262, 1.0
  %265 = vrot.lane.b32.xlu0 %v120, 32
  %v266 = vpop.permute.xlu0 %265
  %v268 = vmul.f32 %v261, %v266
  %270 = vrot.lane.b32.xlu0 %v263, 32
  %v271 = vpop.permute.xlu0 %270
  %v273 = vmul.f32 %v261, %v271
  %275 = vrot.lane.b32.xlu0 %v273, 32
  %v276 = vpop.permute.xlu0 %275
  %v278 = vadd.f32 %v268, %v276
  %v279 = vtanh.pop %v278
  %281 = vrot.lane.b32.xlu0 %v279, 32
  %v282 = vpop.permute.xlu0 %281
  %v284 = vmul.f32 %v261, %v282
  %v285 = vadd.f32 %v240, %v78
  %v286 = vxor.u32 %v285, 2147483648
  %v287 = vmul.f32 %v286, 1.442695
  %v288 = vpow.pop %v287
  %v289 = vadd.f32 %v288, 1.0
  %v290 = vrcp.pop %v289
  %v291 = vmul.f32 %v289, %v290
  %v292 = vsub.f32 1.0, %v291
  %v293 = vmul.f32 %v290, %v292
  %v294 = vadd.f32 %v290, %v293
  %vm295 = vweird.f32 %v289
  %vm296 = vweird.f32 %v290
  %vm297 = vmor %vm295, %vm296
  %v298 = vsel %vm297, %v290, %v294
  %v299 = vand.u32 2147483647, %v289
  %vm300 = vcmp.eq.f32.partialorder %v299, 8.507059e+37
  %v301 = vand.u32 %v289, 2147483648
  %v302 = vor.u32 1.1754944e-38, %v301
  %v303 = vsel %vm300, %v302, %v298
  %v304 = vmul.f32 1.0, %v303
  %v305 = vmul.f32 %v304, 2.0
  %v306 = vsub.f32 %v305, 1.0
  %v307 = vmul.f32 %v304, %v187
  %309 = vrot.lane.b32.xlu0 %v306, 32
  %v310 = vpop.permute.xlu0 %309
  %v312 = vmul.f32 %v304, %v310
  %314 = vrot.lane.b32.xlu0 %v312, 32
  %v315 = vpop.permute.xlu0 %314
  %v317 = vadd.f32 %v307, %v315
  %v318 = vtanh.pop %v317
  %320 = vrot.lane.b32.xlu0 %v318, 32
  %v321 = vpop.permute.xlu0 %320
  %v323 = vmul.f32 %v304, %v321
  %325 = vrot.lane.b32.xlu0 %v323, 64
  %v326 = vpop.permute.xlu0 %325
  %329 = vrot.lane.b32.xlu0 %v284, 96
  %v330 = vpop.permute.xlu0 %329
  %v332 = vsel %vm125, %v326, %v330
  %v334 = vsel %vm127, %v332, 0
  %336 = vmatpush.msra.mxu0 0.0
  %337 = vmatpush.msra.mxu0 0.0
  %338 = vmatpush.msra.mxu0 0.0
  %339 = vmatpush.msra.mxu0 0.0
  %340 = vmatpush.msra.mxu0 0.0
  %341 = vmatpush.msra.mxu0 0.0
  %342 = vmatpush.msra.mxu0 0.0
  %343 = vmatpush.msra.mxu0 0.0
  %344 = vmatpush.msra.mxu0 %v112
  %345 = vmatpush.msra.mxu0 %v110
  %346 = vmatpush.msra.mxu0 %v108
  %347 = vmatpush.msra.mxu0 %v106
  %348 = vmatpush.msra.mxu0 %v104
  %349 = vmatpush.msra.mxu0 %v102
  %350 = vmatpush.msra.mxu0 %v100
  %351 = vmatpush.msra.mxu0 %v98
  %352 = vmatmul.f32.gmra.mxu0 %v334
  %v353 = vpop.f32.mrf.mxu0
  %v354 = vadd.f32 0.0, %v353
  %355 = vdwg.mxu0
  %356 = vmatpush.msra.mxu0 0.0
  %357 = vmatpush.msra.mxu0 0.0
  %358 = vmatpush.msra.mxu0 0.0
  %359 = vmatpush.msra.mxu0 0.0
  %360 = vmatpush.msra.mxu0 0.0
  %361 = vmatpush.msra.mxu0 0.0
  %362 = vmatpush.msra.mxu0 0.0
  %363 = vmatpush.msra.mxu0 0.0
  %364 = vmatpush.msra.mxu0 %v113
  %365 = vmatpush.msra.mxu0 %v111
  %366 = vmatpush.msra.mxu0 %v109
  %367 = vmatpush.msra.mxu0 %v107
  %368 = vmatpush.msra.mxu0 %v105
  %369 = vmatpush.msra.mxu0 %v103
  %370 = vmatpush.msra.mxu0 %v101
  %371 = vmatpush.msra.mxu0 %v99
  %372 = vmatmul.f32.gmra.mxu0 %v334
  %v373 = vpop.f32.mrf.mxu0
  %v374 = vadd.f32 0.0, %v373
  %375 = vdwg.mxu0
  %v376 = vadd.f32 %v354, %v22
  %v377 = vxor.u32 %v376, 2147483648
  %v378 = vmul.f32 %v377, 1.442695
  %v379 = vpow.pop %v378
  %v380 = vadd.f32 %v379, 1.0
  %v381 = vrcp.pop %v380
  %v382 = vmul.f32 %v380, %v381
  %v383 = vsub.f32 1.0, %v382
  %v384 = vmul.f32 %v381, %v383
  %v385 = vadd.f32 %v381, %v384
  %vm386 = vweird.f32 %v380
  %vm387 = vweird.f32 %v381
  %vm388 = vmor %vm386, %vm387
  %v389 = vsel %vm388, %v381, %v385
  %v390 = vand.u32 2147483647, %v380
  %vm391 = vcmp.eq.f32.partialorder %v390, 8.507059e+37
  %v392 = vand.u32 %v380, 2147483648
  %v393 = vor.u32 1.1754944e-38, %v392
  %v394 = vsel %vm391, %v393, %v389
  %v395 = vmul.f32 1.0, %v394
  %v396 = vmul.f32 %v395, 2.0
  %v397 = vsub.f32 %v396, 1.0
  %v398 = vmul.f32 %v395, %v278
  %400 = vrot.lane.b32.xlu0 %v397, 32
  %v401 = vpop.permute.xlu0 %400
  %v403 = vmul.f32 %v395, %v401
  %405 = vrot.lane.b32.xlu0 %v403, 32
  %v406 = vpop.permute.xlu0 %405
  %v408 = vadd.f32 %v398, %v406
  %v409 = vtanh.pop %v408
  %411 = vrot.lane.b32.xlu0 %v409, 32
  %v412 = vpop.permute.xlu0 %411
  %v414 = vmul.f32 %v395, %v412
  %v415 = vadd.f32 %v374, %v81
  %v416 = vxor.u32 %v415, 2147483648
  %v417 = vmul.f32 %v416, 1.442695
  %v418 = vpow.pop %v417
  %v419 = vadd.f32 %v418, 1.0
  %v420 = vrcp.pop %v419
  %v421 = vmul.f32 %v419, %v420
  %v422 = vsub.f32 1.0, %v421
  %v423 = vmul.f32 %v420, %v422
  %v424 = vadd.f32 %v420, %v423
  %vm425 = vweird.f32 %v419
  %vm426 = vweird.f32 %v420
  %vm427 = vmor %vm425, %vm426
  %v428 = vsel %vm427, %v420, %v424
  %v429 = vand.u32 2147483647, %v419
  %vm430 = vcmp.eq.f32.partialorder %v429, 8.507059e+37
  %v431 = vand.u32 %v419, 2147483648
  %v432 = vor.u32 1.1754944e-38, %v431
  %v433 = vsel %vm430, %v432, %v428
  %v434 = vmul.f32 1.0, %v433
  %v435 = vmul.f32 %v434, 2.0
  %v436 = vsub.f32 %v435, 1.0
  %v437 = vmul.f32 %v434, %v317
  %439 = vrot.lane.b32.xlu0 %v436, 32
  %v440 = vpop.permute.xlu0 %439
  %v442 = vmul.f32 %v434, %v440
  %444 = vrot.lane.b32.xlu0 %v442, 32
  %v445 = vpop.permute.xlu0 %444
  %v447 = vadd.f32 %v437, %v445
  %v448 = vtanh.pop %v447
  %450 = vrot.lane.b32.xlu0 %v448, 32
  %v451 = vpop.permute.xlu0 %450
  %v453 = vmul.f32 %v434, %v451
  %455 = vrot.lane.b32.xlu0 %v453, 64
  %v456 = vpop.permute.xlu0 %455
  %459 = vrot.lane.b32.xlu0 %v414, 96
  %v460 = vpop.permute.xlu0 %459
  %v462 = vsel %vm125, %v456, %v460
  %v464 = vsel %vm127, %v462, 0
  %466 = vmatpush.msra.mxu0 0.0
  %467 = vmatpush.msra.mxu0 0.0
  %468 = vmatpush.msra.mxu0 0.0
  %469 = vmatpush.msra.mxu0 0.0
  %470 = vmatpush.msra.mxu0 0.0
  %471 = vmatpush.msra.mxu0 0.0
  %472 = vmatpush.msra.mxu0 0.0
  %473 = vmatpush.msra.mxu0 0.0
  %474 = vmatpush.msra.mxu0 %v112
  %475 = vmatpush.msra.mxu0 %v110
  %476 = vmatpush.msra.mxu0 %v108
  %477 = vmatpush.msra.mxu0 %v106
  %478 = vmatpush.msra.mxu0 %v104
  %479 = vmatpush.msra.mxu0 %v102
  %480 = vmatpush.msra.mxu0 %v100
  %481 = vmatpush.msra.mxu0 %v98
  %482 = vmatmul.f32.gmra.mxu0 %v464
  %v483 = vpop.f32.mrf.mxu0
  %v484 = vadd.f32 0.0, %v483
  %485 = vdwg.mxu0
  %486 = vmatpush.msra.mxu0 0.0
  %487 = vmatpush.msra.mxu0 0.0
  %488 = vmatpush.msra.mxu0 0.0
  %489 = vmatpush.msra.mxu0 0.0
  %490 = vmatpush.msra.mxu0 0.0
  %491 = vmatpush.msra.mxu0 0.0
  %492 = vmatpush.msra.mxu0 0.0
  %493 = vmatpush.msra.mxu0 0.0
  %494 = vmatpush.msra.mxu0 %v113
  %495 = vmatpush.msra.mxu0 %v111
  %496 = vmatpush.msra.mxu0 %v109
  %497 = vmatpush.msra.mxu0 %v107
  %498 = vmatpush.msra.mxu0 %v105
  %499 = vmatpush.msra.mxu0 %v103
  %500 = vmatpush.msra.mxu0 %v101
  %501 = vmatpush.msra.mxu0 %v99
  %502 = vmatmul.f32.gmra.mxu0 %v464
  %v503 = vpop.f32.mrf.mxu0
  %v504 = vadd.f32 0.0, %v503
  %505 = vdwg.mxu0
  %v506 = vadd.f32 %v484, %v22
  %v507 = vxor.u32 %v506, 2147483648
  %v508 = vmul.f32 %v507, 1.442695
  %v509 = vpow.pop %v508
  %v510 = vadd.f32 %v509, 1.0
  %v511 = vrcp.pop %v510
  %v512 = vmul.f32 %v510, %v511
  %v513 = vsub.f32 1.0, %v512
  %v514 = vmul.f32 %v511, %v513
  %v515 = vadd.f32 %v511, %v514
  %vm516 = vweird.f32 %v510
  %vm517 = vweird.f32 %v511
  %vm518 = vmor %vm516, %vm517
  %v519 = vsel %vm518, %v511, %v515
  %v520 = vand.u32 2147483647, %v510
  %vm521 = vcmp.eq.f32.partialorder %v520, 8.507059e+37
  %v522 = vand.u32 %v510, 2147483648
  %v523 = vor.u32 1.1754944e-38, %v522
  %v524 = vsel %vm521, %v523, %v519
  %v525 = vmul.f32 1.0, %v524
  %v526 = vmul.f32 %v525, 2.0
  %v527 = vsub.f32 %v526, 1.0
  %v528 = vmul.f32 %v525, %v408
  %530 = vrot.lane.b32.xlu0 %v527, 32
  %v531 = vpop.permute.xlu0 %530
  %v533 = vmul.f32 %v525, %v531
  %535 = vrot.lane.b32.xlu0 %v533, 32
  %v536 = vpop.permute.xlu0 %535
  %v538 = vadd.f32 %v528, %v536
  %v539 = vtanh.pop %v538
  %541 = vrot.lane.b32.xlu0 %v539, 32
  %v542 = vpop.permute.xlu0 %541
  %v544 = vmul.f32 %v525, %v542
  %v545 = vadd.f32 %v504, %v84
  %v546 = vxor.u32 %v545, 2147483648
  %v547 = vmul.f32 %v546, 1.442695
  %v548 = vpow.pop %v547
  %v549 = vadd.f32 %v548, 1.0
  %v550 = vrcp.pop %v549
  %v551 = vmul.f32 %v549, %v550
  %v552 = vsub.f32 1.0, %v551
  %v553 = vmul.f32 %v550, %v552
  %v554 = vadd.f32 %v550, %v553
  %vm555 = vweird.f32 %v549
  %vm556 = vweird.f32 %v550
  %vm557 = vmor %vm555, %vm556
  %v558 = vsel %vm557, %v550, %v554
  %v559 = vand.u32 2147483647, %v549
  %vm560 = vcmp.eq.f32.partialorder %v559, 8.507059e+37
  %v561 = vand.u32 %v549, 2147483648
  %v562 = vor.u32 1.1754944e-38, %v561
  %v563 = vsel %vm560, %v562, %v558
  %v564 = vmul.f32 1.0, %v563
  %v565 = vmul.f32 %v564, 2.0
  %v566 = vsub.f32 %v565, 1.0
  %v567 = vmul.f32 %v564, %v447
  %569 = vrot.lane.b32.xlu0 %v566, 32
  %v570 = vpop.permute.xlu0 %569
  %v572 = vmul.f32 %v564, %v570
  %574 = vrot.lane.b32.xlu0 %v572, 32
  %v575 = vpop.permute.xlu0 %574
  %v577 = vadd.f32 %v567, %v575
  %v578 = vtanh.pop %v577
  %580 = vrot.lane.b32.xlu0 %v578, 32
  %v581 = vpop.permute.xlu0 %580
  %v583 = vmul.f32 %v564, %v581
  %585 = vrot.lane.b32.xlu0 %v583, 64
  %v586 = vpop.permute.xlu0 %585
  %589 = vrot.lane.b32.xlu0 %v544, 96
  %v590 = vpop.permute.xlu0 %589
  %v592 = vsel %vm125, %v586, %v590
  %v594 = vsel %vm127, %v592, 0
  %596 = vmatpush.msra.mxu0 0.0
  %597 = vmatpush.msra.mxu0 0.0
  %598 = vmatpush.msra.mxu0 0.0
  %599 = vmatpush.msra.mxu0 0.0
  %600 = vmatpush.msra.mxu0 0.0
  %601 = vmatpush.msra.mxu0 0.0
  %602 = vmatpush.msra.mxu0 0.0
  %603 = vmatpush.msra.mxu0 0.0
  %604 = vmatpush.msra.mxu0 %v112
  %605 = vmatpush.msra.mxu0 %v110
  %606 = vmatpush.msra.mxu0 %v108
  %607 = vmatpush.msra.mxu0 %v106
  %608 = vmatpush.msra.mxu0 %v104
  %609 = vmatpush.msra.mxu0 %v102
  %610 = vmatpush.msra.mxu0 %v100
  %611 = vmatpush.msra.mxu0 %v98
  %612 = vmatmul.f32.gmra.mxu0 %v594
  %v613 = vpop.f32.mrf.mxu0
  %v614 = vadd.f32 0.0, %v613
  %615 = vdwg.mxu0
  %616 = vmatpush.msra.mxu0 0.0
  %617 = vmatpush.msra.mxu0 0.0
  %618 = vmatpush.msra.mxu0 0.0
  %619 = vmatpush.msra.mxu0 0.0
  %620 = vmatpush.msra.mxu0 0.0
  %621 = vmatpush.msra.mxu0 0.0
  %622 = vmatpush.msra.mxu0 0.0
  %623 = vmatpush.msra.mxu0 0.0
  %624 = vmatpush.msra.mxu0 %v113
  %625 = vmatpush.msra.mxu0 %v111
  %626 = vmatpush.msra.mxu0 %v109
  %627 = vmatpush.msra.mxu0 %v107
  %628 = vmatpush.msra.mxu0 %v105
  %629 = vmatpush.msra.mxu0 %v103
  %630 = vmatpush.msra.mxu0 %v101
  %631 = vmatpush.msra.mxu0 %v99
  %632 = vmatmul.f32.gmra.mxu0 %v594
  %v633 = vpop.f32.mrf.mxu0
  %v634 = vadd.f32 0.0, %v633
  %635 = vdwg.mxu0
  %v636 = vadd.f32 %v614, %v22
  %v637 = vxor.u32 %v636, 2147483648
  %v638 = vmul.f32 %v637, 1.442695
  %v639 = vpow.pop %v638
  %v640 = vadd.f32 %v639, 1.0
  %v641 = vrcp.pop %v640
  %v642 = vmul.f32 %v640, %v641
  %v643 = vsub.f32 1.0, %v642
  %v644 = vmul.f32 %v641, %v643
  %v645 = vadd.f32 %v641, %v644
  %vm646 = vweird.f32 %v640
  %vm647 = vweird.f32 %v641
  %vm648 = vmor %vm646, %vm647
  %v649 = vsel %vm648, %v641, %v645
  %v650 = vand.u32 2147483647, %v640
  %vm651 = vcmp.eq.f32.partialorder %v650, 8.507059e+37
  %v652 = vand.u32 %v640, 2147483648
  %v653 = vor.u32 1.1754944e-38, %v652
  %v654 = vsel %vm651, %v653, %v649
  %v655 = vmul.f32 1.0, %v654
  %v656 = vmul.f32 %v655, 2.0
  %v657 = vsub.f32 %v656, 1.0
  %v658 = vmul.f32 %v655, %v538
  %660 = vrot.lane.b32.xlu0 %v657, 32
  %v661 = vpop.permute.xlu0 %660
  %v663 = vmul.f32 %v655, %v661
  %665 = vrot.lane.b32.xlu0 %v663, 32
  %v666 = vpop.permute.xlu0 %665
  %v668 = vadd.f32 %v658, %v666
  %v669 = vtanh.pop %v668
  %671 = vrot.lane.b32.xlu0 %v669, 32
  %v672 = vpop.permute.xlu0 %671
  %v674 = vmul.f32 %v655, %v672
  %v675 = vadd.f32 %v634, %v87
  %v676 = vxor.u32 %v675, 2147483648
  %v677 = vmul.f32 %v676, 1.442695
  %v678 = vpow.pop %v677
  %v679 = vadd.f32 %v678, 1.0
  %v680 = vrcp.pop %v679
  %v681 = vmul.f32 %v679, %v680
  %v682 = vsub.f32 1.0, %v681
  %v683 = vmul.f32 %v680, %v682
  %v684 = vadd.f32 %v680, %v683
  %vm685 = vweird.f32 %v679
  %vm686 = vweird.f32 %v680
  %vm687 = vmor %vm685, %vm686
  %v688 = vsel %vm687, %v680, %v684
  %v689 = vand.u32 2147483647, %v679
  %vm690 = vcmp.eq.f32.partialorder %v689, 8.507059e+37
  %v691 = vand.u32 %v679, 2147483648
  %v692 = vor.u32 1.1754944e-38, %v691
  %v693 = vsel %vm690, %v692, %v688
  %v694 = vmul.f32 1.0, %v693
  %v695 = vmul.f32 %v694, 2.0
  %v696 = vsub.f32 %v695, 1.0
  %v697 = vmul.f32 %v694, %v577
  %699 = vrot.lane.b32.xlu0 %v696, 32
  %v700 = vpop.permute.xlu0 %699
  %v702 = vmul.f32 %v694, %v700
  %704 = vrot.lane.b32.xlu0 %v702, 32
  %v705 = vpop.permute.xlu0 %704
  %v707 = vadd.f32 %v697, %v705
  %v708 = vtanh.pop %v707
  %710 = vrot.lane.b32.xlu0 %v708, 32
  %v711 = vpop.permute.xlu0 %710
  %v713 = vmul.f32 %v694, %v711
  %715 = vrot.lane.b32.xlu0 %v713, 64
  %v716 = vpop.permute.xlu0 %715
  %719 = vrot.lane.b32.xlu0 %v674, 96
  %v720 = vpop.permute.xlu0 %719
  %v722 = vsel %vm125, %v716, %v720
  %v724 = vsel %vm127, %v722, 0
  %726 = vmatpush.msra.mxu0 0.0
  %727 = vmatpush.msra.mxu0 0.0
  %728 = vmatpush.msra.mxu0 0.0
  %729 = vmatpush.msra.mxu0 0.0
  %730 = vmatpush.msra.mxu0 0.0
  %731 = vmatpush.msra.mxu0 0.0
  %732 = vmatpush.msra.mxu0 0.0
  %733 = vmatpush.msra.mxu0 0.0
  %734 = vmatpush.msra.mxu0 %v112
  %735 = vmatpush.msra.mxu0 %v110
  %736 = vmatpush.msra.mxu0 %v108
  %737 = vmatpush.msra.mxu0 %v106
  %738 = vmatpush.msra.mxu0 %v104
  %739 = vmatpush.msra.mxu0 %v102
  %740 = vmatpush.msra.mxu0 %v100
  %741 = vmatpush.msra.mxu0 %v98
  %742 = vmatmul.f32.gmra.mxu0 %v724
  %v743 = vpop.f32.mrf.mxu0
  %v744 = vadd.f32 0.0, %v743
  %745 = vdwg.mxu0
  %746 = vmatpush.msra.mxu0 0.0
  %747 = vmatpush.msra.mxu0 0.0
  %748 = vmatpush.msra.mxu0 0.0
  %749 = vmatpush.msra.mxu0 0.0
  %750 = vmatpush.msra.mxu0 0.0
  %751 = vmatpush.msra.mxu0 0.0
  %752 = vmatpush.msra.mxu0 0.0
  %753 = vmatpush.msra.mxu0 0.0
  %754 = vmatpush.msra.mxu0 %v113
  %755 = vmatpush.msra.mxu0 %v111
  %756 = vmatpush.msra.mxu0 %v109
  %757 = vmatpush.msra.mxu0 %v107
  %758 = vmatpush.msra.mxu0 %v105
  %759 = vmatpush.msra.mxu0 %v103
  %760 = vmatpush.msra.mxu0 %v101
  %761 = vmatpush.msra.mxu0 %v99
  %762 = vmatmul.f32.gmra.mxu0 %v724
  %v763 = vpop.f32.mrf.mxu0
  %v764 = vadd.f32 0.0, %v763
  %765 = vdwg.mxu0
  %v766 = vadd.f32 %v744, %v22
  %v767 = vxor.u32 %v766, 2147483648
  %v768 = vmul.f32 %v767, 1.442695
  %v769 = vpow.pop %v768
  %v770 = vadd.f32 %v769, 1.0
  %v771 = vrcp.pop %v770
  %v772 = vmul.f32 %v770, %v771
  %v773 = vsub.f32 1.0, %v772
  %v774 = vmul.f32 %v771, %v773
  %v775 = vadd.f32 %v771, %v774
  %vm776 = vweird.f32 %v770
  %vm777 = vweird.f32 %v771
  %vm778 = vmor %vm776, %vm777
  %v779 = vsel %vm778, %v771, %v775
  %v780 = vand.u32 2147483647, %v770
  %vm781 = vcmp.eq.f32.partialorder %v780, 8.507059e+37
  %v782 = vand.u32 %v770, 2147483648
  %v783 = vor.u32 1.1754944e-38, %v782
  %v784 = vsel %vm781, %v783, %v779
  %v785 = vmul.f32 1.0, %v784
  %v786 = vmul.f32 %v785, 2.0
  %v787 = vsub.f32 %v786, 1.0
  %v788 = vmul.f32 %v785, %v668
  %790 = vrot.lane.b32.xlu0 %v787, 32
  %v791 = vpop.permute.xlu0 %790
  %v793 = vmul.f32 %v785, %v791
  %795 = vrot.lane.b32.xlu0 %v793, 32
  %v796 = vpop.permute.xlu0 %795
  %v798 = vadd.f32 %v788, %v796
  %v799 = vtanh.pop %v798
  %801 = vrot.lane.b32.xlu0 %v799, 32
  %v802 = vpop.permute.xlu0 %801
  %v804 = vmul.f32 %v785, %v802
  %v805 = vadd.f32 %v764, %v90
  %v806 = vxor.u32 %v805, 2147483648
  %v807 = vmul.f32 %v806, 1.442695
  %v808 = vpow.pop %v807
  %v809 = vadd.f32 %v808, 1.0
  %v810 = vrcp.pop %v809
  %v811 = vmul.f32 %v809, %v810
  %v812 = vsub.f32 1.0, %v811
  %v813 = vmul.f32 %v810, %v812
  %v814 = vadd.f32 %v810, %v813
  %vm815 = vweird.f32 %v809
  %vm816 = vweird.f32 %v810
  %vm817 = vmor %vm815, %vm816
  %v818 = vsel %vm817, %v810, %v814
  %v819 = vand.u32 2147483647, %v809
  %vm820 = vcmp.eq.f32.partialorder %v819, 8.507059e+37
  %v821 = vand.u32 %v809, 2147483648
  %v822 = vor.u32 1.1754944e-38, %v821
  %v823 = vsel %vm820, %v822, %v818
  %v824 = vmul.f32 1.0, %v823
  %v825 = vmul.f32 %v824, 2.0
  %v826 = vsub.f32 %v825, 1.0
  %v827 = vmul.f32 %v824, %v707
  %829 = vrot.lane.b32.xlu0 %v826, 32
  %v830 = vpop.permute.xlu0 %829
  %v832 = vmul.f32 %v824, %v830
  %834 = vrot.lane.b32.xlu0 %v832, 32
  %v835 = vpop.permute.xlu0 %834
  %v837 = vadd.f32 %v827, %v835
  %v838 = vtanh.pop %v837
  %840 = vrot.lane.b32.xlu0 %v838, 32
  %v841 = vpop.permute.xlu0 %840
  %v843 = vmul.f32 %v824, %v841
  %845 = vrot.lane.b32.xlu0 %v843, 64
  %v846 = vpop.permute.xlu0 %845
  %849 = vrot.lane.b32.xlu0 %v804, 96
  %v850 = vpop.permute.xlu0 %849
  %v852 = vsel %vm125, %v846, %v850
  %v854 = vsel %vm127, %v852, 0
  %856 = vmatpush.msra.mxu0 0.0
  %857 = vmatpush.msra.mxu0 0.0
  %858 = vmatpush.msra.mxu0 0.0
  %859 = vmatpush.msra.mxu0 0.0
  %860 = vmatpush.msra.mxu0 0.0
  %861 = vmatpush.msra.mxu0 0.0
  %862 = vmatpush.msra.mxu0 0.0
  %863 = vmatpush.msra.mxu0 0.0
  %864 = vmatpush.msra.mxu0 %v112
  %865 = vmatpush.msra.mxu0 %v110
  %866 = vmatpush.msra.mxu0 %v108
  %867 = vmatpush.msra.mxu0 %v106
  %868 = vmatpush.msra.mxu0 %v104
  %869 = vmatpush.msra.mxu0 %v102
  %870 = vmatpush.msra.mxu0 %v100
  %871 = vmatpush.msra.mxu0 %v98
  %872 = vmatmul.f32.gmra.mxu0 %v854
  %v873 = vpop.f32.mrf.mxu0
  %v874 = vadd.f32 0.0, %v873
  %875 = vdwg.mxu0
  %876 = vmatpush.msra.mxu0 0.0
  %877 = vmatpush.msra.mxu0 0.0
  %878 = vmatpush.msra.mxu0 0.0
  %879 = vmatpush.msra.mxu0 0.0
  %880 = vmatpush.msra.mxu0 0.0
  %881 = vmatpush.msra.mxu0 0.0
  %882 = vmatpush.msra.mxu0 0.0
  %883 = vmatpush.msra.mxu0 0.0
  %884 = vmatpush.msra.mxu0 %v113
  %885 = vmatpush.msra.mxu0 %v111
  %886 = vmatpush.msra.mxu0 %v109
  %887 = vmatpush.msra.mxu0 %v107
  %888 = vmatpush.msra.mxu0 %v105
  %889 = vmatpush.msra.mxu0 %v103
  %890 = vmatpush.msra.mxu0 %v101
  %891 = vmatpush.msra.mxu0 %v99
  %892 = vmatmul.f32.gmra.mxu0 %v854
  %v893 = vpop.f32.mrf.mxu0
  %v894 = vadd.f32 0.0, %v893
  %895 = vdwg.mxu0
  %v896 = vadd.f32 %v874, %v22
  %v897 = vxor.u32 %v896, 2147483648
  %v898 = vmul.f32 %v897, 1.442695
  %v899 = vpow.pop %v898
  %v900 = vadd.f32 %v899, 1.0
  %v901 = vrcp.pop %v900
  %v902 = vmul.f32 %v900, %v901
  %v903 = vsub.f32 1.0, %v902
  %v904 = vmul.f32 %v901, %v903
  %v905 = vadd.f32 %v901, %v904
  %vm906 = vweird.f32 %v900
  %vm907 = vweird.f32 %v901
  %vm908 = vmor %vm906, %vm907
  %v909 = vsel %vm908, %v901, %v905
  %v910 = vand.u32 2147483647, %v900
  %vm911 = vcmp.eq.f32.partialorder %v910, 8.507059e+37
  %v912 = vand.u32 %v900, 2147483648
  %v913 = vor.u32 1.1754944e-38, %v912
  %v914 = vsel %vm911, %v913, %v909
  %v915 = vmul.f32 1.0, %v914
  %v916 = vmul.f32 %v915, 2.0
  %v917 = vsub.f32 %v916, 1.0
  %v918 = vmul.f32 %v915, %v798
  %920 = vrot.lane.b32.xlu0 %v917, 32
  %v921 = vpop.permute.xlu0 %920
  %v923 = vmul.f32 %v915, %v921
  %925 = vrot.lane.b32.xlu0 %v923, 32
  %v926 = vpop.permute.xlu0 %925
  %v928 = vadd.f32 %v918, %v926
  %v929 = vtanh.pop %v928
  %931 = vrot.lane.b32.xlu0 %v929, 32
  %v932 = vpop.permute.xlu0 %931
  %v934 = vmul.f32 %v915, %v932
  %v935 = vadd.f32 %v894, %v93
  %v936 = vxor.u32 %v935, 2147483648
  %v937 = vmul.f32 %v936, 1.442695
  %v938 = vpow.pop %v937
  %v939 = vadd.f32 %v938, 1.0
  %v940 = vrcp.pop %v939
  %v941 = vmul.f32 %v939, %v940
  %v942 = vsub.f32 1.0, %v941
  %v943 = vmul.f32 %v940, %v942
  %v944 = vadd.f32 %v940, %v943
  %vm945 = vweird.f32 %v939
  %vm946 = vweird.f32 %v940
  %vm947 = vmor %vm945, %vm946
  %v948 = vsel %vm947, %v940, %v944
  %v949 = vand.u32 2147483647, %v939
  %vm950 = vcmp.eq.f32.partialorder %v949, 8.507059e+37
  %v951 = vand.u32 %v939, 2147483648
  %v952 = vor.u32 1.1754944e-38, %v951
  %v953 = vsel %vm950, %v952, %v948
  %v954 = vmul.f32 1.0, %v953
  %v955 = vmul.f32 %v954, 2.0
  %v956 = vsub.f32 %v955, 1.0
  %v957 = vmul.f32 %v954, %v837
  %959 = vrot.lane.b32.xlu0 %v956, 32
  %v960 = vpop.permute.xlu0 %959
  %v962 = vmul.f32 %v954, %v960
  %964 = vrot.lane.b32.xlu0 %v962, 32
  %v965 = vpop.permute.xlu0 %964
  %v967 = vadd.f32 %v957, %v965
  %v968 = vtanh.pop %v967
  %970 = vrot.lane.b32.xlu0 %v968, 32
  %v971 = vpop.permute.xlu0 %970
  %v973 = vmul.f32 %v954, %v971
  %975 = vrot.lane.b32.xlu0 %v973, 64
  %v976 = vpop.permute.xlu0 %975
  %979 = vrot.lane.b32.xlu0 %v934, 96
  %v980 = vpop.permute.xlu0 %979
  %v982 = vsel %vm125, %v976, %v980
  %v984 = vsel %vm127, %v982, 0
  %986 = vmatpush.msra.mxu0 0.0
  %987 = vmatpush.msra.mxu0 0.0
  %988 = vmatpush.msra.mxu0 0.0
  %989 = vmatpush.msra.mxu0 0.0
  %990 = vmatpush.msra.mxu0 0.0
  %991 = vmatpush.msra.mxu0 0.0
  %992 = vmatpush.msra.mxu0 0.0
  %993 = vmatpush.msra.mxu0 0.0
  %994 = vmatpush.msra.mxu0 %v112
  %995 = vmatpush.msra.mxu0 %v110
  %996 = vmatpush.msra.mxu0 %v108
  %997 = vmatpush.msra.mxu0 %v106
  %998 = vmatpush.msra.mxu0 %v104
  %999 = vmatpush.msra.mxu0 %v102
  %1000 = vmatpush.msra.mxu0 %v100
  %1001 = vmatpush.msra.mxu0 %v98
  %1002 = vmatmul.f32.gmra.mxu0 %v984
  %v1003 = vpop.f32.mrf.mxu0
  %v1004 = vadd.f32 0.0, %v1003
  %1005 = vdwg.mxu0
  %1006 = vmatpush.msra.mxu0 0.0
  %1007 = vmatpush.msra.mxu0 0.0
  %1008 = vmatpush.msra.mxu0 0.0
  %1009 = vmatpush.msra.mxu0 0.0
  %1010 = vmatpush.msra.mxu0 0.0
  %1011 = vmatpush.msra.mxu0 0.0
  %1012 = vmatpush.msra.mxu0 0.0
  %1013 = vmatpush.msra.mxu0 0.0
  %1014 = vmatpush.msra.mxu0 %v113
  %1015 = vmatpush.msra.mxu0 %v111
  %1016 = vmatpush.msra.mxu0 %v109
  %1017 = vmatpush.msra.mxu0 %v107
  %1018 = vmatpush.msra.mxu0 %v105
  %1019 = vmatpush.msra.mxu0 %v103
  %1020 = vmatpush.msra.mxu0 %v101
  %1021 = vmatpush.msra.mxu0 %v99
  %1022 = vmatmul.f32.gmra.mxu0 %v984
  %v1023 = vpop.f32.mrf.mxu0
  %v1024 = vadd.f32 0.0, %v1023
  %1025 = vdwg.mxu0
  %v1026 = vadd.f32 %v1004, %v22
  %v1027 = vxor.u32 %v1026, 2147483648
  %v1028 = vmul.f32 %v1027, 1.442695
  %v1029 = vpow.pop %v1028
  %v1030 = vadd.f32 %v1029, 1.0
  %v1031 = vrcp.pop %v1030
  %v1032 = vmul.f32 %v1030, %v1031
  %v1033 = vsub.f32 1.0, %v1032
  %v1034 = vmul.f32 %v1031, %v1033
  %v1035 = vadd.f32 %v1031, %v1034
  %vm1036 = vweird.f32 %v1030
  %vm1037 = vweird.f32 %v1031
  %vm1038 = vmor %vm1036, %vm1037
  %v1039 = vsel %vm1038, %v1031, %v1035
  %v1040 = vand.u32 2147483647, %v1030
  %vm1041 = vcmp.eq.f32.partialorder %v1040, 8.507059e+37
  %v1042 = vand.u32 %v1030, 2147483648
  %v1043 = vor.u32 1.1754944e-38, %v1042
  %v1044 = vsel %vm1041, %v1043, %v1039
  %v1045 = vmul.f32 1.0, %v1044
  %v1046 = vmul.f32 %v1045, 2.0
  %v1047 = vsub.f32 %v1046, 1.0
  %v1048 = vmul.f32 %v1045, %v928
  %1050 = vrot.lane.b32.xlu0 %v1047, 32
  %v1051 = vpop.permute.xlu0 %1050
  %v1053 = vmul.f32 %v1045, %v1051
  %1055 = vrot.lane.b32.xlu0 %v1053, 32
  %v1056 = vpop.permute.xlu0 %1055
  %v1058 = vadd.f32 %v1048, %v1056
  %v1059 = vtanh.pop %v1058
  %1061 = vrot.lane.b32.xlu0 %v1059, 32
  %v1062 = vpop.permute.xlu0 %1061
  %v1064 = vmul.f32 %v1045, %v1062
  %v1065 = vadd.f32 %v1024, %v96
  %v1066 = vxor.u32 %v1065, 2147483648
  %v1067 = vmul.f32 %v1066, 1.442695
  %v1068 = vpow.pop %v1067
  %v1069 = vadd.f32 %v1068, 1.0
  %v1070 = vrcp.pop %v1069
  %v1071 = vmul.f32 %v1069, %v1070
  %v1072 = vsub.f32 1.0, %v1071
  %v1073 = vmul.f32 %v1070, %v1072
  %v1074 = vadd.f32 %v1070, %v1073
  %vm1075 = vweird.f32 %v1069
  %vm1076 = vweird.f32 %v1070
  %vm1077 = vmor %vm1075, %vm1076
  %v1078 = vsel %vm1077, %v1070, %v1074
  %v1079 = vand.u32 2147483647, %v1069
  %vm1080 = vcmp.eq.f32.partialorder %v1079, 8.507059e+37
  %v1081 = vand.u32 %v1069, 2147483648
  %v1082 = vor.u32 1.1754944e-38, %v1081
  %v1083 = vsel %vm1080, %v1082, %v1078
  %v1084 = vmul.f32 1.0, %v1083
  %v1085 = vmul.f32 %v1084, 2.0
  %v1086 = vsub.f32 %v1085, 1.0
  %v1087 = vmul.f32 %v1084, %v967
  %1089 = vrot.lane.b32.xlu0 %v1086, 32
  %v1090 = vpop.permute.xlu0 %1089
  %v1092 = vmul.f32 %v1084, %v1090
  %1094 = vrot.lane.b32.xlu0 %v1092, 32
  %v1095 = vpop.permute.xlu0 %1094
  %v1097 = vadd.f32 %v1087, %v1095
  %v1098 = vtanh.pop %v1097
  %1100 = vrot.lane.b32.xlu0 %v1098, 32
  %v1101 = vpop.permute.xlu0 %1100
  %v1103 = vmul.f32 %v1084, %v1101
  %1105 = vrot.lane.b32.xlu0 %v1103, 64
  %v1106 = vpop.permute.xlu0 %1105
  %1109 = vrot.lane.b32.xlu0 %v1064, 96
  %v1110 = vpop.permute.xlu0 %1109
  %v1112 = vsel %vm125, %v1106, %v1110
  %v1114 = vsel %vm127, %v1112, 0
  %1116 = vmatpush.msra.mxu0 0.0
  %1117 = vmatpush.msra.mxu0 0.0
  %1118 = vmatpush.msra.mxu0 0.0
  %1119 = vmatpush.msra.mxu0 0.0
  %1120 = vmatpush.msra.mxu0 0.0
  %1121 = vmatpush.msra.mxu0 0.0
  %1122 = vmatpush.msra.mxu0 0.0
  %1123 = vmatpush.msra.mxu0 0.0
  %1124 = vmatpush.msra.mxu0 %v112
  %1125 = vmatpush.msra.mxu0 %v110
  %1126 = vmatpush.msra.mxu0 %v108
  %1127 = vmatpush.msra.mxu0 %v106
  %1128 = vmatpush.msra.mxu0 %v104
  %1129 = vmatpush.msra.mxu0 %v102
  %1130 = vmatpush.msra.mxu0 %v100
  %1131 = vmatpush.msra.mxu0 %v98
  %1132 = vmatmul.f32.gmra.mxu0 %v1114
  %v1133 = vpop.f32.mrf.mxu0
  %v1134 = vadd.f32 0.0, %v1133
  %1135 = vdwg.mxu0
  %v1136 = vadd.f32 %v1134, %v22
  %v1137 = vxor.u32 %v1136, 2147483648
  %v1138 = vmul.f32 %v1137, 1.442695
  %v1139 = vpow.pop %v1138
  %v1140 = vadd.f32 %v1139, 1.0
  %v1141 = vrcp.pop %v1140
  %v1142 = vmul.f32 %v1140, %v1141
  %v1143 = vsub.f32 1.0, %v1142
  %v1144 = vmul.f32 %v1141, %v1143
  %v1145 = vadd.f32 %v1141, %v1144
  %vm1146 = vweird.f32 %v1140
  %vm1147 = vweird.f32 %v1141
  %vm1148 = vmor %vm1146, %vm1147
  %v1149 = vsel %vm1148, %v1141, %v1145
  %v1150 = vand.u32 2147483647, %v1140
  %vm1151 = vcmp.eq.f32.partialorder %v1150, 8.507059e+37
  %v1152 = vand.u32 %v1140, 2147483648
  %v1153 = vor.u32 1.1754944e-38, %v1152
  %v1154 = vsel %vm1151, %v1153, %v1149
  %v1155 = vmul.f32 1.0, %v1154
  %v1156 = vmul.f32 %v1155, 2.0
  %v1157 = vsub.f32 %v1156, 1.0
  %v1158 = vmul.f32 %v1155, %v1058
  %1160 = vrot.lane.b32.xlu0 %v1157, 32
  %v1161 = vpop.permute.xlu0 %1160
  %v1163 = vmul.f32 %v1155, %v1161
  %1165 = vrot.lane.b32.xlu0 %v1163, 32
  %v1166 = vpop.permute.xlu0 %1165
  %v1168 = vadd.f32 %v1158, %v1166
  %v1169 = vtanh.pop %v1168
  %1171 = vrot.lane.b32.xlu0 %v1169, 32
  %v1172 = vpop.permute.xlu0 %1171
  %v1174 = vmul.f32 %v1155, %v1172
  %v1175 = vld [vmem:[%s4] sm:$0xff]
  %v1176 = vld [vmem:[%s4 + $0x8] sm:$0xff]
  %v1177 = vld [vmem:[%s4 + $0x10] sm:$0xff]
  %v1178 = vld [vmem:[%s4 + $0x18] sm:$0xff]
  %v1179 = vld [vmem:[%s4 + $0x20] sm:$0xff]
  %v1180 = vld [vmem:[%s4 + $0x28] sm:$0xff]
  %v1181 = vld [vmem:[%s4 + $0x30] sm:$0xff]
  %v1182 = vld [vmem:[%s4 + $0x38] sm:$0xff]
  %v1183 = vld [vmem:[%s4 + $0x40] sm:$0xff]
  %v1184 = vld [vmem:[%s4 + $0x48] sm:$0xff]
  %v1185 = vperm.slane %v1179, 0
  %1187 = vrot.lane.b32.xlu0 %v1174, 64
  %v1188 = vpop.permute.xlu0 %1187
  %v1189 = vsel %vm125, %v1188, 0
  %1191 = vmatpush.msra.mxu0 0.0
  %1192 = vmatpush.msra.mxu0 0.0
  %1193 = vmatpush.msra.mxu0 0.0
  %1194 = vmatpush.msra.mxu0 0.0
  %1195 = vmatpush.msra.mxu0 0.0
  %1196 = vmatpush.msra.mxu0 0.0
  %1197 = vmatpush.msra.mxu0 0.0
  %1198 = vmatpush.msra.mxu0 0.0
  %1199 = vmatpush.msra.mxu0 0.0
  %1200 = vmatpush.msra.mxu0 0.0
  %1201 = vmatpush.msra.mxu0 0.0
  %1202 = vmatpush.msra.mxu0 0.0
  %1203 = vmatpush.msra.mxu0 %v1178
  %1204 = vmatpush.msra.mxu0 %v1177
  %1205 = vmatpush.msra.mxu0 %v1176
  %1206 = vmatpush.msra.mxu0 %v1175
  %1207 = vmatmul.f32.gmra.mxu0 %v1189
  %v1208 = vpop.f32.mrf.mxu0
  %v1209 = vadd.f32 %v1185, %v1208
  %1210 = vdwg.mxu0
  %v1211 = vmax.f32 %v1209, 0.0
  %v1212 = vperm.slane %v1184, 0
  %v1214 = vsel %vm125, %v1211, 0
  %1216 = vmatpush.msra.mxu0 0.0
  %1217 = vmatpush.msra.mxu0 0.0
  %1218 = vmatpush.msra.mxu0 0.0
  %1219 = vmatpush.msra.mxu0 0.0
  %1220 = vmatpush.msra.mxu0 0.0
  %1221 = vmatpush.msra.mxu0 0.0
  %1222 = vmatpush.msra.mxu0 0.0
  %1223 = vmatpush.msra.mxu0 0.0
  %1224 = vmatpush.msra.mxu0 0.0
  %1225 = vmatpush.msra.mxu0 0.0
  %1226 = vmatpush.msra.mxu0 0.0
  %1227 = vmatpush.msra.mxu0 0.0
  %1228 = vmatpush.msra.mxu0 %v1183
  %1229 = vmatpush.msra.mxu0 %v1182
  %1230 = vmatpush.msra.mxu0 %v1181
  %1231 = vmatpush.msra.mxu0 %v1180
  %1232 = vmatmul.f32.gmra.mxu0 %v1214
  %v1233 = vpop.f32.mrf.mxu0
  %v1234 = vadd.f32 %v1212, %v1233
  %1235 = vdwg.mxu0
  %1236 = vrot.lane.b32.xlu0 %v1103, 96
  %v1237 = vpop.permute.xlu0 %1236
  %v1239 = vsel %vm125, %v1234, %v1237
  %v1240 = vsel %vm127, %v1239, %v1174
  %vm1241 = vcmask 785408
  %v1242 = vsel %vm1241, %v1240, 0.0
  %1243 = vst [vmem:[%s5] sm:$0xff] %v1242
  // Predicated region
  $region22: #{temporal_regime_encoder.1} parent=0 // pred_check
    _
  $region23: #{temporal_regime_encoder.1} parent=0 // pred_check_branch
    %1245 = sbr.rel (0) target = $region25
  $region24: #{temporal_regime_encoder.1} parent=0 // pred_region
    _
  $region25: #{temporal_regime_encoder.1} parent=0 // pred_fallthru
    _
  // Predicated region
  $region26: #{temporal_regime_encoder.1} parent=0 // pred_check
    _
  $region27: #{temporal_regime_encoder.1} parent=0 // pred_check_branch
    %1247 = sbr.rel (0) target = $region29
  $region28: #{temporal_regime_encoder.1} parent=0 // pred_region
    _
  $region29: #{temporal_regime_encoder.1} parent=0 // pred_fallthru
    _

</llo_original>
